<compile_context>
chip_gen: v6e
topology: v6e:2x2x1
jax: 0.10.0
libtpu: 0.0.40
codegen_flags: <defaults>
</compile_context>

<pallas_src>
import functools

import jax
import jax.numpy as jnp
import numpy as np
from jax.experimental import pallas as pl
from jax.experimental.pallas import tpu as pltpu

LANE = 128
SUBLANE = 8


def _round_up(n, m):
    return ((n + m - 1) // m) * m


def _pad2d(a, rows, cols, dtype=None):
    out = jnp.pad(a, ((0, rows - a.shape[0]), (0, cols - a.shape[1])))
    return out.astype(dtype) if dtype is not None else out


# --------------------------- SAGEConv layer kernel ---------------------------
def sage_layer_kernel(adj_ref, xk_ref, xi_ref, w_ref, h_ref, acc_ref, *, relu):
    """One SAGEConv layer. Grid = (row blocks i [parallel], adj-col blocks k [reduction]).

    acc layout: [:, :F]  accumulates (adj @ x) for this row block over k
                [:, F:]  holds the self features x_i (written once at k == 0)
    finalize:   h = act(acc @ W_cat), W_cat = concat([W_l, W_r], axis=0)
    """
    k = pl.program_id(1)
    F = xk_ref.shape[1]

    @pl.when(k == 0)
    def _init():
        acc_ref[:, :F] = jnp.zeros((acc_ref.shape[0], F), jnp.float32)
        acc_ref[:, F:] = xi_ref[...].astype(jnp.float32)

    acc_ref[:, :F] += jnp.dot(adj_ref[...], xk_ref[...],
                              preferred_element_type=jnp.float32)

    @pl.when(k == pl.num_programs(1) - 1)
    def _finalize():
        h = jnp.dot(acc_ref[...].astype(jnp.bfloat16), w_ref[...],
                    preferred_element_type=jnp.float32)
        if relu:
            h = jnp.maximum(h, 0.0)
        h_ref[...] = h.astype(h_ref.dtype)


def sage_layer(adj, x, w_cat, *, relu, tile_m, tile_k):
    N, F = x.shape
    D = w_cat.shape[1]
    grid = (N // tile_m, N // tile_k)
    # double-buffered bf16 tiles + f32 scratch + headroom
    vmem = (2 * 2 * (tile_m * tile_k + tile_k * F + tile_m * F + 2 * F * D + tile_m * D)
            + 4 * tile_m * 2 * F + (8 << 20))
    return pl.pallas_call(
        functools.partial(sage_layer_kernel, relu=relu),
        out_shape=jax.ShapeDtypeStruct((N, D), jnp.bfloat16),
        grid_spec=pltpu.PrefetchScalarGridSpec(
            num_scalar_prefetch=0,
            grid=grid,
            in_specs=[
                pl.BlockSpec((tile_m, tile_k), lambda i, k: (i, k)),  # adj row/col block
                pl.BlockSpec((tile_k, F), lambda i, k: (k, 0)),       # neighbor feature rows
                pl.BlockSpec((tile_m, F), lambda i, k: (i, 0)),       # self feature rows
                pl.BlockSpec((2 * F, D), lambda i, k: (0, 0)),        # W_cat, VMEM-resident
            ],
            out_specs=pl.BlockSpec((tile_m, D), lambda i, k: (i, 0)),
            scratch_shapes=[pltpu.VMEM((tile_m, 2 * F), jnp.float32)],
        ),
        compiler_params=pltpu.CompilerParams(
            dimension_semantics=("parallel", "arbitrary"),
            vmem_limit_bytes=int(vmem),
        ),
    )(adj, x, x, w_cat)


# ----------------------- global_mean_pool + fc1 + tanh -----------------------
def pool_fc_kernel(pool_ref, h_ref, wfc_ref, out_ref, acc_ref):
    k = pl.program_id(0)

    @pl.when(k == 0)
    def _init():
        acc_ref[...] = jnp.zeros_like(acc_ref)

    acc_ref[...] += jnp.dot(pool_ref[...], h_ref[...],
                            preferred_element_type=jnp.float32)

    @pl.when(k == pl.num_programs(0) - 1)
    def _finalize():
        g = jnp.dot(acc_ref[...].astype(jnp.bfloat16), wfc_ref[...],
                    preferred_element_type=jnp.float32)
        out_ref[...] = jnp.tanh(g).astype(out_ref.dtype)


def pool_fc(pool, h, wfc, *, tile_k):
    Bp, N = pool.shape
    D = h.shape[1]
    O = wfc.shape[1]
    vmem = (2 * 2 * (Bp * tile_k + tile_k * D + D * O + 2 * Bp * O)
            + 4 * Bp * D + (8 << 20))
    return pl.pallas_call(
        pool_fc_kernel,
        out_shape=jax.ShapeDtypeStruct((Bp, O), jnp.float32),
        grid_spec=pltpu.PrefetchScalarGridSpec(
            num_scalar_prefetch=0,
            grid=(N // tile_k,),
            in_specs=[
                pl.BlockSpec((Bp, tile_k), lambda k: (0, k)),   # pool operator
                pl.BlockSpec((tile_k, D), lambda k: (k, 0)),    # node features
                pl.BlockSpec((D, O), lambda k: (0, 0)),         # fc weight, resident
            ],
            out_specs=pl.BlockSpec((Bp, O), lambda k: (0, 0)),
            scratch_shapes=[pltpu.VMEM((Bp, D), jnp.float32)],
        ),
        compiler_params=pltpu.CompilerParams(
            dimension_semantics=("arbitrary",),
            vmem_limit_bytes=int(vmem),
        ),
    )(pool, h, wfc)


# --------------------------------- forward ----------------------------------
def net_graphsage_forward(x, adj, pool, w1l, w1r, w2l, w2r, wfc, *, tile_n=256):
    N, F_in = x.shape
    Dim = w1l.shape[1]
    Out = wfc.shape[1]
    B = pool.shape[0]

    Np = _round_up(N, tile_n)
    Fp = _round_up(F_in, LANE)
    Dp = _round_up(Dim, LANE)
    Op = _round_up(Out, LANE)
    Bp = _round_up(B, SUBLANE)

    bf = jnp.bfloat16
    x_p = _pad2d(x, Np, Fp, bf)
    adj_p = _pad2d(adj, Np, Np, bf)          # bf16 adjacency -> half HBM/VMEM traffic
    pool_p = _pad2d(pool, Bp, Np, bf)

    # fused projection weights: [[W_l], [W_r]] (padded, zero rows/cols are exact)
    w1_cat = jnp.concatenate([_pad2d(w1l, Fp, Dp), _pad2d(w1r, Fp, Dp)], axis=0).astype(bf)
    w2_cat = jnp.concatenate([_pad2d(w2l, Dp, Dp), _pad2d(w2r, Dp, Dp)], axis=0).astype(bf)
    wfc_p = _pad2d(wfc, Dp, Op, bf)

    h1 = sage_layer(adj_p, x_p, w1_cat, relu=True, tile_m=tile_n, tile_k=tile_n)
    h2 = sage_layer(adj_p, h1, w2_cat, relu=False, tile_m=tile_n, tile_k=tile_n)
    out = pool_fc(pool_p, h2, wfc_p, tile_k=tile_n)
    return out[:B, :Out]


def build_dense_operators(edge_index, batch, num_nodes, num_graphs):
    """Plain-JAX glue: scatter sparse graph structure into dense operators (f32)."""
    # TODO(synk): for large sparse graphs, replace this dense O(N^2) adjacency with a
    # CSR / padded-neighbor formulation (scalar-prefetched offsets + DMA row gather).
    src, dst = edge_index[0], edge_index[1]
    counts = jnp.zeros((num_nodes, num_nodes), jnp.float32).at[dst, src].add(1.0)
    deg = counts.sum(axis=1, keepdims=True)
    adj = counts / jnp.maximum(deg, 1.0)  # isolated nodes -> zero row (PyG behavior)
    onehot = jnp.zeros((num_graphs, num_nodes), jnp.float32).at[
        batch, jnp.arange(num_nodes)].set(1.0)
    pool = onehot / jnp.maximum(onehot.sum(axis=1, keepdims=True), 1.0)
    return adj, pool


def reference_forward(x, adj, pool, w1l, w1r, w2l, w2r, wfc):
    h1 = jnp.maximum(adj @ x @ w1l + x @ w1r, 0.0)
    h2 = adj @ h1 @ w2l + h1 @ w2r
    return jnp.tanh(pool @ h2 @ wfc)


if __name__ == "__main__":
    # small deterministic problem (two graphs of 256 nodes each)
    N = 512       # nodes
    E = 2048      # edges
    F_IN = 16     # num_features
    DIM = 32      # SAGEConv hidden dim (module default 10; TPU-friendlier)
    OUT = 8       # output_size
    B = 2         # graphs in the batch
    # activation = "tanh"  (getattr(torch, "tanh"))

    key = jax.random.PRNGKey(0)
    k_x, k_e, k1, k2, k3, k4, k5 = jax.random.split(key, 7)

    x = jax.random.normal(k_x, (N, F_IN), jnp.float32)
    edge_index = jax.random.randint(k_e, (2, E), 0, N, jnp.int32)
    batch = jnp.concatenate([jnp.zeros((N // 2,), jnp.int32),
                             jnp.ones((N - N // 2,), jnp.int32)])

    scale = 0.1
    w1l = scale * jax.random.normal(k1, (F_IN, DIM), jnp.float32)
    w1r = scale * jax.random.normal(k2, (F_IN, DIM), jnp.float32)
    w2l = scale * jax.random.normal(k3, (DIM, DIM), jnp.float32)
    w2r = scale * jax.random.normal(k4, (DIM, DIM), jnp.float32)
    wfc = scale * jax.random.normal(k5, (DIM, OUT), jnp.float32)

    adj, pool = build_dense_operators(edge_index, batch, N, B)

    out = net_graphsage_forward(x, adj, pool, w1l, w1r, w2l, w2r, wfc)
    out = jax.block_until_ready(out)

    ref = reference_forward(x, adj, pool, w1l, w1r, w2l, w2r, wfc)
    # bf16 operands (f32 accumulation) -> relaxed tolerance vs. the f32 reference
    np.testing.assert_allclose(np.asarray(out), np.asarray(ref), rtol=3e-2, atol=1e-2)

    print("KERNEL_OK")
</pallas_src>

<mosaic_0001>
module attributes {stable_mosaic.version = 11 : i64} {
  func.func @sage_layer_kernel(%arg0: i32, %arg1: i32, %arg2: memref<256x256xbf16, #tpu.memory_space<vmem>>, %arg3: memref<256x128xbf16, #tpu.memory_space<vmem>>, %arg4: memref<256x128xbf16, #tpu.memory_space<vmem>>, %arg5: memref<256x128xbf16, #tpu.memory_space<vmem>>, %arg6: memref<256x128xbf16, #tpu.memory_space<vmem>>, %arg7: memref<256x256xf32, #tpu.memory_space<vmem>>) attributes {dimension_semantics = [#tpu.dimension_semantics<parallel>, #tpu.dimension_semantics<arbitrary>], iteration_bounds = array<i64: 2, 2>, scalar_prefetch = 0 : i64, scratch_operands = 1 : i64, tpu.core_type = #tpu.core_type<tc>, window_params = [{transform_indices = @transform_0, window_bounds = array<i64: 256, 256>}, {transform_indices = @transform_1, window_bounds = array<i64: 256, 128>}, {transform_indices = @transform_2, window_bounds = array<i64: 256, 128>}, {pipeline_mode = #tpu.pipeline_mode<synchronous>, transform_indices = @transform_3, window_bounds = array<i64: 256, 128>}, {transform_indices = @transform_4, window_bounds = array<i64: 256, 128>}]} {
    %c0_i32 = arith.constant 0 : i32
    %0 = arith.cmpi eq, %arg1, %c0_i32 : i32
    %1 = arith.extui %0 : i1 to i32
    %c0_i32_0 = arith.constant 0 : i32
    %2 = arith.cmpi ne, %1, %c0_i32_0 : i32
    scf.if %2 {
      %cst_9 = arith.constant 0.000000e+00 : f32
      %12 = vector.broadcast %cst_9 : f32 to vector<256x128xf32>
      %c0_10 = arith.constant 0 : index
      %c0_11 = arith.constant 0 : index
      %13 = vector.load %arg7[%c0_10, %c0_11] : memref<256x256xf32, #tpu.memory_space<vmem>>, vector<256x128xf32>
      tpu.vector_store %arg7[%c0_10, %c0_11], %12 {strides = array<i32>} : memref<256x256xf32, #tpu.memory_space<vmem>>, vector<256x128xf32>,
      %c0_12 = arith.constant 0 : index
      %c0_13 = arith.constant 0 : index
      %14 = vector.load %arg4[%c0_12, %c0_13] : memref<256x128xbf16, #tpu.memory_space<vmem>>, vector<256x128xbf16>
      %15 = arith.extf %14 : vector<256x128xbf16> to vector<256x128xf32>
      %c0_14 = arith.constant 0 : index
      %c128 = arith.constant 128 : index
      %16 = vector.load %arg7[%c0_14, %c128] : memref<256x256xf32, #tpu.memory_space<vmem>>, vector<256x128xf32>
      tpu.vector_store %arg7[%c0_14, %c128], %15 {strides = array<i32>} : memref<256x256xf32, #tpu.memory_space<vmem>>, vector<256x128xf32>,
    } else {
    }
    %c0 = arith.constant 0 : index
    %c0_1 = arith.constant 0 : index
    %3 = vector.load %arg7[%c0, %c0_1] : memref<256x256xf32, #tpu.memory_space<vmem>>, vector<256x128xf32>
    %c0_2 = arith.constant 0 : index
    %c0_3 = arith.constant 0 : index
    %4 = vector.load %arg2[%c0_2, %c0_3] : memref<256x256xbf16, #tpu.memory_space<vmem>>, vector<256x256xbf16>
    %c0_4 = arith.constant 0 : index
    %c0_5 = arith.constant 0 : index
    %5 = vector.load %arg3[%c0_4, %c0_5] : memref<256x128xbf16, #tpu.memory_space<vmem>>, vector<256x128xbf16>
    %cst = arith.constant dense<0.000000e+00> : vector<256x128xf32>
    %6 = tpu.matmul %4, %5, %cst {dimension_numbers = #tpu.dot_dimension_numbers<[1], [0], [0], [1], [0, 0, 1, 1], [], []>} : vector<256x256xbf16>, vector<256x128xbf16>, vector<256x128xf32> -> vector<256x128xf32>
    %7 = arith.addf %3, %6 : vector<256x128xf32>
    %c0_6 = arith.constant 0 : index
    %c0_7 = arith.constant 0 : index
    %8 = vector.load %arg7[%c0_6, %c0_7] : memref<256x256xf32, #tpu.memory_space<vmem>>, vector<256x128xf32>
    tpu.vector_store %arg7[%c0_6, %c0_7], %7 {strides = array<i32>} : memref<256x256xf32, #tpu.memory_space<vmem>>, vector<256x128xf32>,
    %c1_i32 = arith.constant 1 : i32
    %9 = arith.cmpi eq, %arg1, %c1_i32 : i32
    %10 = arith.extui %9 : i1 to i32
    %c0_i32_8 = arith.constant 0 : i32
    %11 = arith.cmpi ne, %10, %c0_i32_8 : i32
    scf.if %11 {
      %c0_9 = arith.constant 0 : index
      %c0_10 = arith.constant 0 : index
      %12 = vector.load %arg7[%c0_9, %c0_10] : memref<256x256xf32, #tpu.memory_space<vmem>>, vector<256x256xf32>
      %13 = arith.truncf %12 : vector<256x256xf32> to vector<256x256xbf16>
      %c0_11 = arith.constant 0 : index
      %c0_12 = arith.constant 0 : index
      %14 = vector.load %arg5[%c0_11, %c0_12] : memref<256x128xbf16, #tpu.memory_space<vmem>>, vector<256x128xbf16>
      %cst_13 = arith.constant dense<0.000000e+00> : vector<256x128xf32>
      %15 = tpu.matmul %13, %14, %cst_13 {dimension_numbers = #tpu.dot_dimension_numbers<[1], [0], [0], [1], [0, 0, 1, 1], [], []>} : vector<256x256xbf16>, vector<256x128xbf16>, vector<256x128xf32> -> vector<256x128xf32>
      %cst_14 = arith.constant 0.000000e+00 : f32
      %16 = vector.broadcast %cst_14 : f32 to vector<256x128xf32>
      %17 = arith.maximumf %15, %16 : vector<256x128xf32>
      %18 = arith.truncf %17 : vector<256x128xf32> to vector<256x128xbf16>
      %c0_15 = arith.constant 0 : index
      %c0_16 = arith.constant 0 : index
      %19 = vector.load %arg6[%c0_15, %c0_16] : memref<256x128xbf16, #tpu.memory_space<vmem>>, vector<256x128xbf16>
      tpu.vector_store %arg6[%c0_15, %c0_16], %18 {strides = array<i32>} : memref<256x128xbf16, #tpu.memory_space<vmem>>, vector<256x128xbf16>,
    } else {
    }
    return
  }
  func.func @transform_0(%arg0: i32, %arg1: i32) -> (i32, i32) {
    %c0_i32 = arith.constant 0 : i32
    return %arg0, %arg1 : i32, i32
  }
  func.func @transform_1(%arg0: i32, %arg1: i32) -> (i32, i32) {
    %c0_i32 = arith.constant 0 : i32
    %c0_i32_0 = arith.constant 0 : i32
    return %arg1, %c0_i32 : i32, i32
  }
  func.func @transform_2(%arg0: i32, %arg1: i32) -> (i32, i32) {
    %c0_i32 = arith.constant 0 : i32
    %c0_i32_0 = arith.constant 0 : i32
    return %arg0, %c0_i32 : i32, i32
  }
  func.func @transform_3(%arg0: i32, %arg1: i32) -> (i32, i32) {
    %c0_i32 = arith.constant 0 : i32
    %c0_i32_0 = arith.constant 0 : i32
    %c0_i32_1 = arith.constant 0 : i32
    return %c0_i32, %c0_i32_0 : i32, i32
  }
  func.func @transform_4(%arg0: i32, %arg1: i32) -> (i32, i32) {
    %c0_i32 = arith.constant 0 : i32
    %c0_i32_0 = arith.constant 0 : i32
    return %arg0, %c0_i32 : i32, i32
  }
}

</mosaic_0001>

<llo_original>
// kernel: tpu_custom_call.1
$region0: #{tpu_custom_call.1}
  #allocation0 [shape = 'u32[]', space=smem, size = 0x4, offset = 0x4, fixed_abs, tag = 'smem constant byte address 0x4 - core index']
  #allocation1 [shape = 'u32[144,128]{1,0:T(1,128)}', space=vmem, size = 0x12000, scoped, tag = 'internal scratch']
  #allocation2 [shape = 'f32[256,256]{1,0:T(8,128)}', space=vmem, size = 0x40000, scoped, tag = 'scratch operand']
  %s0 = inlined_call_operand.hbm [shape: bf16[512,512], index: 0, kind: input, shape index: {}]
  %s1 = inlined_call_operand.hbm [shape: bf16[512,128], index: 1, kind: input, shape index: {}]
  %s2 = inlined_call_operand.hbm [shape: bf16[512,128], index: 2, kind: input, shape index: {}]
  %s3 = inlined_call_operand.hbm [shape: bf16[256,128], index: 3, kind: input, shape index: {}]
  %s4 = inlined_call_operand.hbm [shape: bf16[512,128], index: 4, kind: output, shape index: {}]
  %s5 = sld [smem:[#allocation0]]
  $region73: #{tpu_custom_call.1} parent=0
    _
  %s7 = ssub.s32 1, %s5
  %s8 = scalar_select 0, %s7, %s5
  $region1: #{tpu_custom_call.1} parent=0
    #allocation3 [shape = 'u8[262144]{0}', space=vmem, size = 0x40000, scoped, tag = 'input window, operand 0']
    #allocation4 [shape = 's32[2]{0}', space=sflag, size = 0x8, scoped, tag = 'scoped memory for tpu_custom_call.1']
    #allocation5 [shape = 's32[2]{0}', space=sflag, size = 0x8, scoped, tag = 'scoped memory for tpu_custom_call.1']
    #allocation6 [shape = 'u8[131072]{0}', space=vmem, size = 0x20000, scoped, tag = 'input window, operand 1']
    #allocation7 [shape = 's32[2]{0}', space=sflag, size = 0x8, scoped, tag = 'scoped memory for tpu_custom_call.1']
    #allocation8 [shape = 'u8[131072]{0}', space=vmem, size = 0x20000, scoped, tag = 'input window, operand 2']
    #allocation9 [shape = 'u8[65536]{0}', space=vmem, size = 0x10000, scoped, tag = 'input window, operand 3, single buffered']
    #allocation10 [shape = 's32[1]{0}', space=sflag, size = 0x4, scoped, tag = 'scoped memory for tpu_custom_call.1']
    #allocation11 [shape = 'u8[131072]{0}', space=vmem, size = 0x20000, scoped, tag = 'output window, operand 0']
    %9 = vsyncpa [#allocation4], 0
    %s10 = scalar_lea.sflag [#allocation4], 1
    %11 = vsyncpa %s10, 0
    %12 = vsyncpa [#allocation7], 0
    %s13 = scalar_lea.sflag [#allocation7], 1
    %14 = vsyncpa %s13, 0
    %15 = vsyncpa [#allocation10], 0
    %16 = vsyncpa [#allocation5], 0
    %s17 = scalar_lea.sflag [#allocation5], 1
    %18 = vsyncpa %s17, 0
    loop: start=0, step=1, limit=6
    $region2: #{tpu_custom_call.1} parent=1 // loop_pre_header
      _
    $region3: #{tpu_custom_call.1} parent=1 // loop_header
      %s20 = sphi 0, %s24
      %p21 = scmp.ge.s32.totalorder %s20, 6
      %s27 = sphi 0, %s39
      %s28 = sphi 0, %s35
      %s29 = sphi 0, %s27
      %s30 = sphi 0, %s28
      %s31 = sphi 0, %s29
      %s32 = sphi 0, %s30
      %s44 = sphi 0, %s46
      %s47 = sphi 0, %s44
      %s48 = sphi 0, %s47
      %s64 = sphi 0, %s48
      %s70 = sphi 0, %s72
      %s73 = sphi 0, %s70
      %s74 = sphi 0, %s73
      %s90 = sphi 0, %s74
      %s96 = sphi 0, %s98
      %s99 = sphi 0, %s96
      %s100 = sphi 0, %s99
      %s116 = sphi 0, %s100
      %s120 = sphi 0, %s120
      %s122 = sphi 0, %s120
      %s123 = sphi 0, %s122
      %s137 = sphi 0, %s123
      %s143 = sphi 0, %s145
      %s146 = sphi 0, %s143
      %s147 = sphi 0, %s146
      %s163 = sphi 0, %s147
    $region4: #{tpu_custom_call.1} parent=1 // loop_header_branch
      %23 = sbr.rel (%p21) target = $region8
    $region5: #{tpu_custom_call.1} parent=1 // loop_body
      %s25 = ssub.s32 %s20, 1
      %s26 = ssub.s32 %s20, 2
      %s33 = sadd.s32 1, %s28
      %p34 = scmp.ge.s32.totalorder %s33, 2
      %s35 = scalar_select %p34, 0, %s33
      %s36 = sadd.s32 1, %s27
      %s37 = scalar_select %p34, %s36, %s27
      %p38 = scmp.ge.s32.totalorder %s37, 2
      %s39 = scalar_select %p38, 0, %s37
      %s40 = ssub.s32 %s27, %s39
      %s41 = ssub.s32 %s28, %s35
      %s42 = sor.u32 %s40, %s41
      %p43 = scmp.eq.s32.totalorder %s42, 0
      %s45 = sadd.s32 %s44, 1
      %s46 = scalar_select %p43, %s44, %s45
      %p49 = pneg %p43
      %p50 = scmp.eq.s32.totalorder %s20, 3
      %p51 = por %p49, %p50
      %p52 = scmp.ne.s32.totalorder %s44, %s47
      %p53 = scmp.eq.s32.totalorder %s20, 0
      %p54 = por %p52, %p53
      %p55 = scmp.ne.s32.totalorder %s44, %s47
      %p56 = scmp.eq.s32.totalorder %s25, 3
      %p57 = por %p55, %p56
      %p58 = scmp.ne.s32.totalorder %s47, %s48
      %p59 = scmp.eq.s32.totalorder %s25, 0
      %p60 = por %p58, %p59
      %p61 = scmp.ne.s32.totalorder %s47, %s48
      %p62 = scmp.eq.s32.totalorder %s26, 3
      %p63 = por %p61, %p62
      %p65 = scmp.ne.s32.totalorder %s48, %s64
      %p66 = scmp.eq.s32.totalorder %s26, 0
      %p67 = por %p65, %p66
      %s68 = ssub.s32 %s28, %s35
      %p69 = scmp.eq.s32.totalorder %s68, 0
      %s71 = sadd.s32 %s70, 1
      %s72 = scalar_select %p69, %s70, %s71
      %p75 = pneg %p69
      %p76 = scmp.eq.s32.totalorder %s20, 3
      %p77 = por %p75, %p76
      %p78 = scmp.ne.s32.totalorder %s70, %s73
      %p79 = scmp.eq.s32.totalorder %s20, 0
      %p80 = por %p78, %p79
      %p81 = scmp.ne.s32.totalorder %s70, %s73
      %p82 = scmp.eq.s32.totalorder %s25, 3
      %p83 = por %p81, %p82
      %p84 = scmp.ne.s32.totalorder %s73, %s74
      %p85 = scmp.eq.s32.totalorder %s25, 0
      %p86 = por %p84, %p85
      %p87 = scmp.ne.s32.totalorder %s73, %s74
      %p88 = scmp.eq.s32.totalorder %s26, 3
      %p89 = por %p87, %p88
      %p91 = scmp.ne.s32.totalorder %s74, %s90
      %p92 = scmp.eq.s32.totalorder %s26, 0
      %p93 = por %p91, %p92
      %s94 = ssub.s32 %s27, %s39
      %p95 = scmp.eq.s32.totalorder %s94, 0
      %s97 = sadd.s32 %s96, 1
      %s98 = scalar_select %p95, %s96, %s97
      %p101 = pneg %p95
      %p102 = scmp.eq.s32.totalorder %s20, 3
      %p103 = por %p101, %p102
      %p104 = scmp.ne.s32.totalorder %s96, %s99
      %p105 = scmp.eq.s32.totalorder %s20, 0
      %p106 = por %p104, %p105
      %p107 = scmp.ne.s32.totalorder %s96, %s99
      %p108 = scmp.eq.s32.totalorder %s25, 3
      %p109 = por %p107, %p108
      %p110 = scmp.ne.s32.totalorder %s99, %s100
      %p111 = scmp.eq.s32.totalorder %s25, 0
      %p112 = por %p110, %p111
      %p113 = scmp.ne.s32.totalorder %s99, %s100
      %p114 = scmp.eq.s32.totalorder %s26, 3
      %p115 = por %p113, %p114
      %p117 = scmp.ne.s32.totalorder %s100, %s116
      %p118 = scmp.eq.s32.totalorder %s26, 0
      %p119 = por %p117, %p118
      %s121 = sadd.s32 %s120, 1
      %p124 = scmp.eq.s32.totalorder %s20, 3
      %p125 = scmp.ne.s32.totalorder %s120, %s122
      %p126 = scmp.eq.s32.totalorder %s20, 0
      %p127 = por %p125, %p126
      %p128 = scmp.ne.s32.totalorder %s120, %s122
      %p129 = scmp.eq.s32.totalorder %s25, 3
      %p130 = por %p128, %p129
      %p131 = scmp.ne.s32.totalorder %s122, %s123
      %p132 = scmp.eq.s32.totalorder %s25, 0
      %p133 = por %p131, %p132
      %p134 = scmp.ne.s32.totalorder %s122, %s123
      %p135 = scmp.eq.s32.totalorder %s26, 3
      %p136 = por %p134, %p135
      %p138 = scmp.ne.s32.totalorder %s123, %s137
      %p139 = scmp.eq.s32.totalorder %s26, 0
      %p140 = por %p138, %p139
      %s141 = ssub.s32 %s27, %s39
      %p142 = scmp.eq.s32.totalorder %s141, 0
      %s144 = sadd.s32 %s143, 1
      %s145 = scalar_select %p142, %s143, %s144
      %p148 = pneg %p142
      %p149 = scmp.eq.s32.totalorder %s20, 3
      %p150 = por %p148, %p149
      %p151 = scmp.ne.s32.totalorder %s143, %s146
      %p152 = scmp.eq.s32.totalorder %s20, 0
      %p153 = por %p151, %p152
      %p154 = scmp.ne.s32.totalorder %s143, %s146
      %p155 = scmp.eq.s32.totalorder %s25, 3
      %p156 = por %p154, %p155
      %p157 = scmp.ne.s32.totalorder %s146, %s147
      %p158 = scmp.eq.s32.totalorder %s25, 0
      %p159 = por %p157, %p158
      %p160 = scmp.ne.s32.totalorder %s146, %s147
      %p161 = scmp.eq.s32.totalorder %s26, 3
      %p162 = por %p160, %p161
      %p164 = scmp.ne.s32.totalorder %s147, %s163
      %p165 = scmp.eq.s32.totalorder %s26, 0
      %p166 = por %p164, %p165
      %p167 = scmp.le.s32.totalorder 1, %s20
      %p168 = scmp.lt.s32.totalorder %s20, 5
      %p169 = pnand %p167, %p168
      %p170 = pneg %p169
      // Predicated region
      $region9: #{tpu_custom_call.1} parent=5 // pred_check
        _
      $region10: #{tpu_custom_call.1} parent=5 // pred_check_branch
        %172 = sbr.rel (%p169) target = $region12
      $region11: #{tpu_custom_call.1} parent=5 // pred_region
        %s173 = ssub.s32 %s20, 1
        // Predicated region
        $region13: #{tpu_custom_call.1} parent=11 // pred_check
          %p174 = pneg %p133
        $region14: #{tpu_custom_call.1} parent=11 // pred_check_branch
          %176 = sbr.rel (%p174) target = $region16
        $region15: #{tpu_custom_call.1} parent=11 // pred_region
          %s178 = ssub.s32 2048, 2048
          %179 = vsyncadd [#allocation10], %s178
          %s180 = sshll.u32 [#allocation9], 4
          %s181 = int_to_ptr.vmem [resolvable:$true] %s180
          %186 = dma.hbm_to_vmem [thread:$0]  %s3, 2048, %s181, [#allocation10], 64, 64, 4
        $region16: #{tpu_custom_call.1} parent=11 // pred_fallthru
          _
      $region12: #{tpu_custom_call.1} parent=5 // pred_fallthru
        _
      %p187 = scmp.lt.s32.totalorder %s20, 4
      // Predicated region
      $region17: #{tpu_custom_call.1} parent=5 // pred_check
        %p188 = pneg %p187
      $region18: #{tpu_custom_call.1} parent=5 // pred_check_branch
        %190 = sbr.rel (%p188) target = $region20
      $region19: #{tpu_custom_call.1} parent=5 // pred_region
        // Predicated region
        $region21: #{tpu_custom_call.1} parent=19 // pred_check
          %p191 = pneg %p54
        $region22: #{tpu_custom_call.1} parent=19 // pred_check_branch
          %193 = sbr.rel (%p191) target = $region24
        $region23: #{tpu_custom_call.1} parent=19 // pred_region
          %s194 = sand.u32 %s44, 1
          %s195 = scalar_lea.sflag [#allocation4], %s194
          %s196 = sand.u32 %s44, 1
          %s197 = smul.addr %s196, 256
          %s198 = scalar_lea.vmem [#allocation3], %s197
          %s199 = smul.u32 32, %s27
          %s200 = smul.u32 2, %s28
          %s202 = ssub.s32 4096, 4096
          %203 = vsyncadd %s195, %s202
          %s204 = smul.addr %s199, 4
          %s205 = sadd.s32 %s200, %s204
          %s206 = smul.addr %s205, 64
          %s207 = scalar_lea.hbm %s0, %s206
          %s208 = sshll.u32 %s198, 4
          %s209 = int_to_ptr.vmem [resolvable:$true] %s208
          %214 = dma.hbm_to_vmem [thread:$0]  %s207, 4096, %s209, %s195, 256, 128, 8
        $region24: #{tpu_custom_call.1} parent=19 // pred_fallthru
          _
        // Predicated region
        $region25: #{tpu_custom_call.1} parent=19 // pred_check
          %p215 = pneg %p80
        $region26: #{tpu_custom_call.1} parent=19 // pred_check_branch
          %217 = sbr.rel (%p215) target = $region28
        $region27: #{tpu_custom_call.1} parent=19 // pred_region
          %s218 = sand.u32 %s20, 1
          %s219 = scalar_lea.sflag [#allocation7], %s218
          %s220 = sand.u32 %s70, 1
          %s221 = smul.addr %s220, 128
          %s222 = scalar_lea.vmem [#allocation6], %s221
          %s223 = smul.u32 32, %s28
          %s225 = ssub.s32 2048, 2048
          %226 = vsyncadd %s219, %s225
          %s227 = smul.addr %s223, 64
          %s228 = scalar_lea.hbm %s1, %s227
          %s229 = sshll.u32 %s222, 4
          %s230 = int_to_ptr.vmem [resolvable:$true] %s229
          %235 = dma.hbm_to_vmem [thread:$0]  %s228, 2048, %s230, %s219, 64, 64, 4
        $region28: #{tpu_custom_call.1} parent=19 // pred_fallthru
          _
        // Predicated region
        $region29: #{tpu_custom_call.1} parent=19 // pred_check
          %p236 = pneg %p106
        $region30: #{tpu_custom_call.1} parent=19 // pred_check_branch
          %238 = sbr.rel (%p236) target = $region32
        $region31: #{tpu_custom_call.1} parent=19 // pred_region
          %s239 = sand.u32 %s20, 1
          %s240 = scalar_lea.sflag [#allocation7], %s239
          %s241 = sand.u32 %s96, 1
          %s242 = smul.addr %s241, 128
          %s243 = scalar_lea.vmem [#allocation8], %s242
          %s244 = smul.u32 32, %s27
          %s246 = ssub.s32 2048, 2048
          %247 = vsyncadd %s240, %s246
          %s248 = smul.addr %s244, 64
          %s249 = scalar_lea.hbm %s2, %s248
          %s250 = sshll.u32 %s243, 4
          %s251 = int_to_ptr.vmem [resolvable:$true] %s250
          %256 = dma.hbm_to_vmem [thread:$0]  %s249, 2048, %s251, %s240, 64, 64, 4
        $region32: #{tpu_custom_call.1} parent=19 // pred_fallthru
          _
      $region20: #{tpu_custom_call.1} parent=5 // pred_fallthru
        _
      %p257 = scmp.le.s32.totalorder 1, %s20
      %p258 = scmp.lt.s32.totalorder %s20, 5
      %p259 = pnand %p257, %p258
      %p260 = pneg %p259
      // Predicated region
      $region33: #{tpu_custom_call.1} parent=5 // pred_check
        _
      $region34: #{tpu_custom_call.1} parent=5 // pred_check_branch
        %262 = sbr.rel (%p259) target = $region36
      $region35: #{tpu_custom_call.1} parent=5 // pred_region
        %s263 = ssub.s32 %s20, 1
        %s264 = sand.u32 %s47, 1
        %s265 = scalar_lea.sflag [#allocation4], %s264
        %s266 = sand.u32 %s47, 1
        %s267 = smul.addr %s266, 256
        %s268 = scalar_lea.vmem [#allocation3], %s267
        // Predicated region
        $region37: #{tpu_custom_call.1} parent=35 // pred_check
          %p269 = pneg %p60
        $region38: #{tpu_custom_call.1} parent=35 // pred_check_branch
          %271 = sbr.rel (%p269) target = $region40
        $region39: #{tpu_custom_call.1} parent=35 // pred_region
          %272 = dma.done %s265, 4096
        $region40: #{tpu_custom_call.1} parent=35 // pred_fallthru
          _
        %s273 = sand.u32 %s25, 1
        %s274 = scalar_lea.sflag [#allocation7], %s273
        %s275 = sand.u32 %s73, 1
        %s276 = smul.addr %s275, 128
        %s277 = scalar_lea.vmem [#allocation6], %s276
        // Predicated region
        $region41: #{tpu_custom_call.1} parent=35 // pred_check
          %p278 = pneg %p86
        $region42: #{tpu_custom_call.1} parent=35 // pred_check_branch
          %280 = sbr.rel (%p278) target = $region44
        $region43: #{tpu_custom_call.1} parent=35 // pred_region
          %281 = dma.done %s274, 2048
        $region44: #{tpu_custom_call.1} parent=35 // pred_fallthru
          _
        %s282 = sand.u32 %s25, 1
        %s283 = scalar_lea.sflag [#allocation7], %s282
        %s284 = sand.u32 %s99, 1
        %s285 = smul.addr %s284, 128
        %s286 = scalar_lea.vmem [#allocation8], %s285
        // Predicated region
        $region45: #{tpu_custom_call.1} parent=35 // pred_check
          %p287 = pneg %p112
        $region46: #{tpu_custom_call.1} parent=35 // pred_check_branch
          %289 = sbr.rel (%p287) target = $region48
        $region47: #{tpu_custom_call.1} parent=35 // pred_region
          %290 = dma.done %s283, 2048
        $region48: #{tpu_custom_call.1} parent=35 // pred_fallthru
          _
        // Predicated region
        $region49: #{tpu_custom_call.1} parent=35 // pred_check
          %p291 = pneg %p133
        $region50: #{tpu_custom_call.1} parent=35 // pred_check_branch
          %293 = sbr.rel (%p291) target = $region52
        $region51: #{tpu_custom_call.1} parent=35 // pred_region
          %294 = dma.done [#allocation10], 2048
        $region52: #{tpu_custom_call.1} parent=35 // pred_fallthru
          _
        %s295 = sand.u32 %s47, 1
        %s296 = scalar_lea.sflag [#allocation4], %s295
        %s297 = sand.u32 %s47, 1
        %s298 = smul.addr %s297, 256
        %s299 = scalar_lea.vmem [#allocation3], %s298
        %p300 = pneg %p60
        %p301 = pneg %p57
        %s302 = sand.u32 %s25, 1
        %s303 = scalar_lea.sflag [#allocation7], %s302
        %s304 = sand.u32 %s73, 1
        %s305 = smul.addr %s304, 128
        %s306 = scalar_lea.vmem [#allocation6], %s305
        %p307 = pneg %p86
        %p308 = pneg %p83
        %s309 = sand.u32 %s25, 1
        %s310 = scalar_lea.sflag [#allocation7], %s309
        %s311 = sand.u32 %s99, 1
        %s312 = smul.addr %s311, 128
        %s313 = scalar_lea.vmem [#allocation8], %s312
        %p314 = pneg %p112
        %p315 = pneg %p109
        %p316 = pneg %p133
        %p317 = pneg %p130
        %p318 = pneg %p159
        %p319 = pneg %p156
        %s320 = sand.u32 %s146, 1
        %s321 = scalar_lea.sflag [#allocation5], %s320
        %s322 = sand.u32 %s146, 1
        %s323 = smul.addr %s322, 128
        %s324 = scalar_lea.vmem [#allocation11], %s323
        %s325 = smul.u32 32, %s29
        %s326 = smul.u32 2, %s30
        %s327 = smul.u32 32, %s30
        %s328 = smul.u32 32, %s29
        %s329 = smul.u32 32, %s29
        %p331 = scmp.eq.s32.totalorder %s30, 0
        // Predicated region
        $region53: #{tpu_custom_call.1} parent=35 // pred_check
          %p332 = pneg %p331
        $region54: #{tpu_custom_call.1} parent=35 // pred_check_branch
          %334 = sbr.rel (%p332) target = $region56
        $region55: #{tpu_custom_call.1} parent=35 // pred_region
          %335 = vst [vmem:[#allocation2] sm:$0xff] 0.0
          %336 = vst [vmem:[#allocation2 + $0x10] sm:$0xff] 0.0
          %337 = vst [vmem:[#allocation2 + $0x20] sm:$0xff] 0.0
          %338 = vst [vmem:[#allocation2 + $0x30] sm:$0xff] 0.0
          %339 = vst [vmem:[#allocation2 + $0x40] sm:$0xff] 0.0
          %340 = vst [vmem:[#allocation2 + $0x50] sm:$0xff] 0.0
          %341 = vst [vmem:[#allocation2 + $0x60] sm:$0xff] 0.0
          %342 = vst [vmem:[#allocation2 + $0x70] sm:$0xff] 0.0
          %343 = vst [vmem:[#allocation2 + $0x80] sm:$0xff] 0.0
          %344 = vst [vmem:[#allocation2 + $0x90] sm:$0xff] 0.0
          %345 = vst [vmem:[#allocation2 + $0xa0] sm:$0xff] 0.0
          %346 = vst [vmem:[#allocation2 + $0xb0] sm:$0xff] 0.0
          %347 = vst [vmem:[#allocation2 + $0xc0] sm:$0xff] 0.0
          %348 = vst [vmem:[#allocation2 + $0xd0] sm:$0xff] 0.0
          %349 = vst [vmem:[#allocation2 + $0xe0] sm:$0xff] 0.0
          %350 = vst [vmem:[#allocation2 + $0xf0] sm:$0xff] 0.0
          %351 = vst [vmem:[#allocation2 + $0x100] sm:$0xff] 0.0
          %352 = vst [vmem:[#allocation2 + $0x110] sm:$0xff] 0.0
          %353 = vst [vmem:[#allocation2 + $0x120] sm:$0xff] 0.0
          %354 = vst [vmem:[#allocation2 + $0x130] sm:$0xff] 0.0
          %355 = vst [vmem:[#allocation2 + $0x140] sm:$0xff] 0.0
          %356 = vst [vmem:[#allocation2 + $0x150] sm:$0xff] 0.0
          %357 = vst [vmem:[#allocation2 + $0x160] sm:$0xff] 0.0
          %358 = vst [vmem:[#allocation2 + $0x170] sm:$0xff] 0.0
          %359 = vst [vmem:[#allocation2 + $0x180] sm:$0xff] 0.0
          %360 = vst [vmem:[#allocation2 + $0x190] sm:$0xff] 0.0
          %361 = vst [vmem:[#allocation2 + $0x1a0] sm:$0xff] 0.0
          %362 = vst [vmem:[#allocation2 + $0x1b0] sm:$0xff] 0.0
          %363 = vst [vmem:[#allocation2 + $0x1c0] sm:$0xff] 0.0
          %364 = vst [vmem:[#allocation2 + $0x1d0] sm:$0xff] 0.0
          %365 = vst [vmem:[#allocation2 + $0x1e0] sm:$0xff] 0.0
          %366 = vst [vmem:[#allocation2 + $0x1f0] sm:$0xff] 0.0
          %v367 = vld [vmem:[%s286] sm:$0xf]
          %v368 = vld [vmem:[%s286 + $0x4] sm:$0xf]
          %v369 = vld [vmem:[%s286 + $0x8] sm:$0xf]
          %v370 = vld [vmem:[%s286 + $0xc] sm:$0xf]
          %v371 = vld [vmem:[%s286 + $0x10] sm:$0xf]
          %v372 = vld [vmem:[%s286 + $0x14] sm:$0xf]
          %v373 = vld [vmem:[%s286 + $0x18] sm:$0xf]
          %v374 = vld [vmem:[%s286 + $0x1c] sm:$0xf]
          %v375 = vld [vmem:[%s286 + $0x20] sm:$0xf]
          %v376 = vld [vmem:[%s286 + $0x24] sm:$0xf]
          %v377 = vld [vmem:[%s286 + $0x28] sm:$0xf]
          %v378 = vld [vmem:[%s286 + $0x2c] sm:$0xf]
          %v379 = vld [vmem:[%s286 + $0x30] sm:$0xf]
          %v380 = vld [vmem:[%s286 + $0x34] sm:$0xf]
          %v381 = vld [vmem:[%s286 + $0x38] sm:$0xf]
          %v382 = vld [vmem:[%s286 + $0x3c] sm:$0xf]
          %v383 = vld [vmem:[%s286 + $0x40] sm:$0xf]
          %v384 = vld [vmem:[%s286 + $0x44] sm:$0xf]
          %v385 = vld [vmem:[%s286 + $0x48] sm:$0xf]
          %v386 = vld [vmem:[%s286 + $0x4c] sm:$0xf]
          %v387 = vld [vmem:[%s286 + $0x50] sm:$0xf]
          %v388 = vld [vmem:[%s286 + $0x54] sm:$0xf]
          %v389 = vld [vmem:[%s286 + $0x58] sm:$0xf]
          %v390 = vld [vmem:[%s286 + $0x5c] sm:$0xf]
          %v391 = vld [vmem:[%s286 + $0x60] sm:$0xf]
          %v392 = vld [vmem:[%s286 + $0x64] sm:$0xf]
          %v393 = vld [vmem:[%s286 + $0x68] sm:$0xf]
          %v394 = vld [vmem:[%s286 + $0x6c] sm:$0xf]
          %v395 = vld [vmem:[%s286 + $0x70] sm:$0xf]
          %v396 = vld [vmem:[%s286 + $0x74] sm:$0xf]
          %v397 = vld [vmem:[%s286 + $0x78] sm:$0xf]
          %v398 = vld [vmem:[%s286 + $0x7c] sm:$0xf]
          %v399 = vunpack.c.l.bf16 %v367
          %v400 = vunpack.c.l.bf16 %v368
          %v401 = vunpack.c.l.bf16 %v369
          %v402 = vunpack.c.l.bf16 %v370
          %v403 = vunpack.c.l.bf16 %v371
          %v404 = vunpack.c.l.bf16 %v372
          %v405 = vunpack.c.l.bf16 %v373
          %v406 = vunpack.c.l.bf16 %v374
          %v407 = vunpack.c.l.bf16 %v375
          %v408 = vunpack.c.l.bf16 %v376
          %v409 = vunpack.c.l.bf16 %v377
          %v410 = vunpack.c.l.bf16 %v378
          %v411 = vunpack.c.l.bf16 %v379
          %v412 = vunpack.c.l.bf16 %v380
          %v413 = vunpack.c.l.bf16 %v381
          %v414 = vunpack.c.l.bf16 %v382
          %v415 = vunpack.c.l.bf16 %v383
          %v416 = vunpack.c.l.bf16 %v384
          %v417 = vunpack.c.l.bf16 %v385
          %v418 = vunpack.c.l.bf16 %v386
          %v419 = vunpack.c.l.bf16 %v387
          %v420 = vunpack.c.l.bf16 %v388
          %v421 = vunpack.c.l.bf16 %v389
          %v422 = vunpack.c.l.bf16 %v390
          %v423 = vunpack.c.l.bf16 %v391
          %v424 = vunpack.c.l.bf16 %v392
          %v425 = vunpack.c.l.bf16 %v393
          %v426 = vunpack.c.l.bf16 %v394
          %v427 = vunpack.c.l.bf16 %v395
          %v428 = vunpack.c.l.bf16 %v396
          %v429 = vunpack.c.l.bf16 %v397
          %v430 = vunpack.c.l.bf16 %v398
          %431 = vst [vmem:[#allocation2 + $0x8] sm:$0xff] %v399
          %432 = vst [vmem:[#allocation2 + $0x18] sm:$0xff] %v400
          %433 = vst [vmem:[#allocation2 + $0x28] sm:$0xff] %v401
          %434 = vst [vmem:[#allocation2 + $0x38] sm:$0xff] %v402
          %435 = vst [vmem:[#allocation2 + $0x48] sm:$0xff] %v403
          %436 = vst [vmem:[#allocation2 + $0x58] sm:$0xff] %v404
          %437 = vst [vmem:[#allocation2 + $0x68] sm:$0xff] %v405
          %438 = vst [vmem:[#allocation2 + $0x78] sm:$0xff] %v406
          %439 = vst [vmem:[#allocation2 + $0x88] sm:$0xff] %v407
          %440 = vst [vmem:[#allocation2 + $0x98] sm:$0xff] %v408
          %441 = vst [vmem:[#allocation2 + $0xa8] sm:$0xff] %v409
          %442 = vst [vmem:[#allocation2 + $0xb8] sm:$0xff] %v410
          %443 = vst [vmem:[#allocation2 + $0xc8] sm:$0xff] %v411
          %444 = vst [vmem:[#allocation2 + $0xd8] sm:$0xff] %v412
          %445 = vst [vmem:[#allocation2 + $0xe8] sm:$0xff] %v413
          %446 = vst [vmem:[#allocation2 + $0xf8] sm:$0xff] %v414
          %447 = vst [vmem:[#allocation2 + $0x108] sm:$0xff] %v415
          %448 = vst [vmem:[#allocation2 + $0x118] sm:$0xff] %v416
          %449 = vst [vmem:[#allocation2 + $0x128] sm:$0xff] %v417
          %450 = vst [vmem:[#allocation2 + $0x138] sm:$0xff] %v418
          %451 = vst [vmem:[#allocation2 + $0x148] sm:$0xff] %v419
          %452 = vst [vmem:[#allocation2 + $0x158] sm:$0xff] %v420
          %453 = vst [vmem:[#allocation2 + $0x168] sm:$0xff] %v421
          %454 = vst [vmem:[#allocation2 + $0x178] sm:$0xff] %v422
          %455 = vst [vmem:[#allocation2 + $0x188] sm:$0xff] %v423
          %456 = vst [vmem:[#allocation2 + $0x198] sm:$0xff] %v424
          %457 = vst [vmem:[#allocation2 + $0x1a8] sm:$0xff] %v425
          %458 = vst [vmem:[#allocation2 + $0x1b8] sm:$0xff] %v426
          %459 = vst [vmem:[#allocation2 + $0x1c8] sm:$0xff] %v427
          %460 = vst [vmem:[#allocation2 + $0x1d8] sm:$0xff] %v428
          %461 = vst [vmem:[#allocation2 + $0x1e8] sm:$0xff] %v429
          %462 = vst [vmem:[#allocation2 + $0x1f8] sm:$0xff] %v430
        $region56: #{tpu_custom_call.1} parent=35 // pred_fallthru
          _
        %v463 = vld [vmem:[#allocation2] sm:$0xff]
        %v464 = vld [vmem:[#allocation2 + $0x10] sm:$0xff]
        %v465 = vld [vmem:[#allocation2 + $0x20] sm:$0xff]
        %v466 = vld [vmem:[#allocation2 + $0x30] sm:$0xff]
        %v467 = vld [vmem:[#allocation2 + $0x40] sm:$0xff]
        %v468 = vld [vmem:[#allocation2 + $0x50] sm:$0xff]
        %v469 = vld [vmem:[#allocation2 + $0x60] sm:$0xff]
        %v470 = vld [vmem:[#allocation2 + $0x70] sm:$0xff]
        %v471 = vld [vmem:[#allocation2 + $0x80] sm:$0xff]
        %v472 = vld [vmem:[#allocation2 + $0x90] sm:$0xff]
        %v473 = vld [vmem:[#allocation2 + $0xa0] sm:$0xff]
        %v474 = vld [vmem:[#allocation2 + $0xb0] sm:$0xff]
        %v475 = vld [vmem:[#allocation2 + $0xc0] sm:$0xff]
        %v476 = vld [vmem:[#allocation2 + $0xd0] sm:$0xff]
        %v477 = vld [vmem:[#allocation2 + $0xe0] sm:$0xff]
        %v478 = vld [vmem:[#allocation2 + $0xf0] sm:$0xff]
        %v479 = vld [vmem:[#allocation2 + $0x100] sm:$0xff]
        %v480 = vld [vmem:[#allocation2 + $0x110] sm:$0xff]
        %v481 = vld [vmem:[#allocation2 + $0x120] sm:$0xff]
        %v482 = vld [vmem:[#allocation2 + $0x130] sm:$0xff]
        %v483 = vld [vmem:[#allocation2 + $0x140] sm:$0xff]
        %v484 = vld [vmem:[#allocation2 + $0x150] sm:$0xff]
        %v485 = vld [vmem:[#allocation2 + $0x160] sm:$0xff]
        %v486 = vld [vmem:[#allocation2 + $0x170] sm:$0xff]
        %v487 = vld [vmem:[#allocation2 + $0x180] sm:$0xff]
        %v488 = vld [vmem:[#allocation2 + $0x190] sm:$0xff]
        %v489 = vld [vmem:[#allocation2 + $0x1a0] sm:$0xff]
        %v490 = vld [vmem:[#allocation2 + $0x1b0] sm:$0xff]
        %v491 = vld [vmem:[#allocation2 + $0x1c0] sm:$0xff]
        %v492 = vld [vmem:[#allocation2 + $0x1d0] sm:$0xff]
        %v493 = vld [vmem:[#allocation2 + $0x1e0] sm:$0xff]
        %v494 = vld [vmem:[#allocation2 + $0x1f0] sm:$0xff]
        %v495 = vld [vmem:[%s268] sm:$0xff]
        %v496 = vld [vmem:[%s268 + $0x8] sm:$0xff]
        %v497 = vld [vmem:[%s268 + $0x10] sm:$0xff]
        %v498 = vld [vmem:[%s268 + $0x18] sm:$0xff]
        %v499 = vld [vmem:[%s268 + $0x20] sm:$0xff]
        %v500 = vld [vmem:[%s268 + $0x28] sm:$0xff]
        %v501 = vld [vmem:[%s268 + $0x30] sm:$0xff]
        %v502 = vld [vmem:[%s268 + $0x38] sm:$0xff]
        %v503 = vld [vmem:[%s268 + $0x40] sm:$0xff]
        %v504 = vld [vmem:[%s268 + $0x48] sm:$0xff]
        %v505 = vld [vmem:[%s268 + $0x50] sm:$0xff]
        %v506 = vld [vmem:[%s268 + $0x58] sm:$0xff]
        %v507 = vld [vmem:[%s268 + $0x60] sm:$0xff]
        %v508 = vld [vmem:[%s268 + $0x68] sm:$0xff]
        %v509 = vld [vmem:[%s268 + $0x70] sm:$0xff]
        %v510 = vld [vmem:[%s268 + $0x78] sm:$0xff]
        %v511 = vld [vmem:[%s268 + $0x80] sm:$0xff]
        %v512 = vld [vmem:[%s268 + $0x88] sm:$0xff]
        %v513 = vld [vmem:[%s268 + $0x90] sm:$0xff]
        %v514 = vld [vmem:[%s268 + $0x98] sm:$0xff]
        %v515 = vld [vmem:[%s268 + $0xa0] sm:$0xff]
        %v516 = vld [vmem:[%s268 + $0xa8] sm:$0xff]
        %v517 = vld [vmem:[%s268 + $0xb0] sm:$0xff]
        %v518 = vld [vmem:[%s268 + $0xb8] sm:$0xff]
        %v519 = vld [vmem:[%s268 + $0xc0] sm:$0xff]
        %v520 = vld [vmem:[%s268 + $0xc8] sm:$0xff]
        %v521 = vld [vmem:[%s268 + $0xd0] sm:$0xff]
        %v522 = vld [vmem:[%s268 + $0xd8] sm:$0xff]
        %v523 = vld [vmem:[%s268 + $0xe0] sm:$0xff]
        %v524 = vld [vmem:[%s268 + $0xe8] sm:$0xff]
        %v525 = vld [vmem:[%s268 + $0xf0] sm:$0xff]
        %v526 = vld [vmem:[%s268 + $0xf8] sm:$0xff]
        %v527 = vld [vmem:[%s277] sm:$0xf]
        %v528 = vld [vmem:[%s277 + $0x4] sm:$0xf]
        %v529 = vld [vmem:[%s277 + $0x8] sm:$0xf]
        %v530 = vld [vmem:[%s277 + $0xc] sm:$0xf]
        %v531 = vld [vmem:[%s277 + $0x10] sm:$0xf]
        %v532 = vld [vmem:[%s277 + $0x14] sm:$0xf]
        %v533 = vld [vmem:[%s277 + $0x18] sm:$0xf]
        %v534 = vld [vmem:[%s277 + $0x1c] sm:$0xf]
        %v535 = vld [vmem:[%s277 + $0x20] sm:$0xf]
        %v536 = vld [vmem:[%s277 + $0x24] sm:$0xf]
        %v537 = vld [vmem:[%s277 + $0x28] sm:$0xf]
        %v538 = vld [vmem:[%s277 + $0x2c] sm:$0xf]
        %v539 = vld [vmem:[%s277 + $0x30] sm:$0xf]
        %v540 = vld [vmem:[%s277 + $0x34] sm:$0xf]
        %v541 = vld [vmem:[%s277 + $0x38] sm:$0xf]
        %v542 = vld [vmem:[%s277 + $0x3c] sm:$0xf]
        %v543 = vld [vmem:[%s277 + $0x40] sm:$0xf]
        %v544 = vld [vmem:[%s277 + $0x44] sm:$0xf]
        %v545 = vld [vmem:[%s277 + $0x48] sm:$0xf]
        %v546 = vld [vmem:[%s277 + $0x4c] sm:$0xf]
        %v547 = vld [vmem:[%s277 + $0x50] sm:$0xf]
        %v548 = vld [vmem:[%s277 + $0x54] sm:$0xf]
        %v549 = vld [vmem:[%s277 + $0x58] sm:$0xf]
        %v550 = vld [vmem:[%s277 + $0x5c] sm:$0xf]
        %v551 = vld [vmem:[%s277 + $0x60] sm:$0xf]
        %v552 = vld [vmem:[%s277 + $0x64] sm:$0xf]
        %v553 = vld [vmem:[%s277 + $0x68] sm:$0xf]
        %v554 = vld [vmem:[%s277 + $0x6c] sm:$0xf]
        %v555 = vld [vmem:[%s277 + $0x70] sm:$0xf]
        %v556 = vld [vmem:[%s277 + $0x74] sm:$0xf]
        %v557 = vld [vmem:[%s277 + $0x78] sm:$0xf]
        %v558 = vld [vmem:[%s277 + $0x7c] sm:$0xf]
        %v591 = vunpack.c.l.b16 %v495
        %v592 = vunpack.c.h.b16 %v495
        %v593 = vunpack.c.l.b16 %v496
        %v594 = vunpack.c.h.b16 %v496
        %v595 = vunpack.c.l.b16 %v497
        %v596 = vunpack.c.h.b16 %v497
        %v597 = vunpack.c.l.b16 %v498
        %v598 = vunpack.c.h.b16 %v498
        %v599 = vunpack.c.l.b16 %v499
        %v600 = vunpack.c.h.b16 %v499
        %v601 = vunpack.c.l.b16 %v500
        %v602 = vunpack.c.h.b16 %v500
        %v603 = vunpack.c.l.b16 %v501
        %v604 = vunpack.c.h.b16 %v501
        %v605 = vunpack.c.l.b16 %v502
        %v606 = vunpack.c.h.b16 %v502
        %v607 = vunpack.c.l.b16 %v503
        %v608 = vunpack.c.h.b16 %v503
        %v609 = vunpack.c.l.b16 %v504
        %v610 = vunpack.c.h.b16 %v504
        %v611 = vunpack.c.l.b16 %v505
        %v612 = vunpack.c.h.b16 %v505
        %v613 = vunpack.c.l.b16 %v506
        %v614 = vunpack.c.h.b16 %v506
        %v615 = vunpack.c.l.b16 %v507
        %v616 = vunpack.c.h.b16 %v507
        %v617 = vunpack.c.l.b16 %v508
        %v618 = vunpack.c.h.b16 %v508
        %v619 = vunpack.c.l.b16 %v509
        %v620 = vunpack.c.h.b16 %v509
        %v621 = vunpack.c.l.b16 %v510
        %v622 = vunpack.c.h.b16 %v510
        %v623 = vunpack.c.l.b16 %v511
        %v624 = vunpack.c.h.b16 %v511
        %v625 = vunpack.c.l.b16 %v512
        %v626 = vunpack.c.h.b16 %v512
        %v627 = vunpack.c.l.b16 %v513
        %v628 = vunpack.c.h.b16 %v513
        %v629 = vunpack.c.l.b16 %v514
        %v630 = vunpack.c.h.b16 %v514
        %v631 = vunpack.c.l.b16 %v515
        %v632 = vunpack.c.h.b16 %v515
        %v633 = vunpack.c.l.b16 %v516
        %v634 = vunpack.c.h.b16 %v516
        %v635 = vunpack.c.l.b16 %v517
        %v636 = vunpack.c.h.b16 %v517
        %v637 = vunpack.c.l.b16 %v518
        %v638 = vunpack.c.h.b16 %v518
        %v639 = vunpack.c.l.b16 %v519
        %v640 = vunpack.c.h.b16 %v519
        %v641 = vunpack.c.l.b16 %v520
        %v642 = vunpack.c.h.b16 %v520
        %v643 = vunpack.c.l.b16 %v521
        %v644 = vunpack.c.h.b16 %v521
        %v645 = vunpack.c.l.b16 %v522
        %v646 = vunpack.c.h.b16 %v522
        %v647 = vunpack.c.l.b16 %v523
        %v648 = vunpack.c.h.b16 %v523
        %v649 = vunpack.c.l.b16 %v524
        %v650 = vunpack.c.h.b16 %v524
        %v651 = vunpack.c.l.b16 %v525
        %v652 = vunpack.c.h.b16 %v525
        %v653 = vunpack.c.l.b16 %v526
        %v654 = vunpack.c.h.b16 %v526
        %v655 = vpack.c.b16 %v593, %v591
        %v656 = vpack.c.b16 %v594, %v592
        %v657 = vpack.c.b16 %v597, %v595
        %v658 = vpack.c.b16 %v598, %v596
        %v659 = vpack.c.b16 %v601, %v599
        %v660 = vpack.c.b16 %v602, %v600
        %v661 = vpack.c.b16 %v605, %v603
        %v662 = vpack.c.b16 %v606, %v604
        %v663 = vpack.c.b16 %v609, %v607
        %v664 = vpack.c.b16 %v610, %v608
        %v665 = vpack.c.b16 %v613, %v611
        %v666 = vpack.c.b16 %v614, %v612
        %v667 = vpack.c.b16 %v617, %v615
        %v668 = vpack.c.b16 %v618, %v616
        %v669 = vpack.c.b16 %v621, %v619
        %v670 = vpack.c.b16 %v622, %v620
        %v671 = vpack.c.b16 %v625, %v623
        %v672 = vpack.c.b16 %v626, %v624
        %v673 = vpack.c.b16 %v629, %v627
        %v674 = vpack.c.b16 %v630, %v628
        %v675 = vpack.c.b16 %v633, %v631
        %v676 = vpack.c.b16 %v634, %v632
        %v677 = vpack.c.b16 %v637, %v635
        %v678 = vpack.c.b16 %v638, %v636
        %v679 = vpack.c.b16 %v641, %v639
        %v680 = vpack.c.b16 %v642, %v640
        %v681 = vpack.c.b16 %v645, %v643
        %v682 = vpack.c.b16 %v646, %v644
        %v683 = vpack.c.b16 %v649, %v647
        %v684 = vpack.c.b16 %v650, %v648
        %v685 = vpack.c.b16 %v653, %v651
        %v686 = vpack.c.b16 %v654, %v652
        %v751 = vunpack.c.l.b16 %v527
        %v752 = vunpack.c.l.b16 %v528
        %v753 = vunpack.c.l.b16 %v529
        %v754 = vunpack.c.l.b16 %v530
        %v755 = vunpack.c.l.b16 %v531
        %v756 = vunpack.c.l.b16 %v532
        %v757 = vunpack.c.l.b16 %v533
        %v758 = vunpack.c.l.b16 %v534
        %v759 = vunpack.c.l.b16 %v535
        %v760 = vunpack.c.l.b16 %v536
        %v761 = vunpack.c.l.b16 %v537
        %v762 = vunpack.c.l.b16 %v538
        %v763 = vunpack.c.l.b16 %v539
        %v764 = vunpack.c.l.b16 %v540
        %v765 = vunpack.c.l.b16 %v541
        %v766 = vunpack.c.l.b16 %v542
        %v767 = vunpack.c.l.b16 %v543
        %v768 = vunpack.c.l.b16 %v544
        %v769 = vunpack.c.l.b16 %v545
        %v770 = vunpack.c.l.b16 %v546
        %v771 = vunpack.c.l.b16 %v547
        %v772 = vunpack.c.l.b16 %v548
        %v773 = vunpack.c.l.b16 %v549
        %v774 = vunpack.c.l.b16 %v550
        %v775 = vunpack.c.l.b16 %v551
        %v776 = vunpack.c.l.b16 %v552
        %v777 = vunpack.c.l.b16 %v553
        %v778 = vunpack.c.l.b16 %v554
        %v779 = vunpack.c.l.b16 %v555
        %v780 = vunpack.c.l.b16 %v556
        %v781 = vunpack.c.l.b16 %v557
        %v782 = vunpack.c.l.b16 %v558
        %v783 = vpack.c.b16 %v752, %v751
        %v784 = vpack.c.b16 %v754, %v753
        %v785 = vpack.c.b16 %v756, %v755
        %v786 = vpack.c.b16 %v758, %v757
        %v787 = vpack.c.b16 %v760, %v759
        %v788 = vpack.c.b16 %v762, %v761
        %v789 = vpack.c.b16 %v764, %v763
        %v790 = vpack.c.b16 %v766, %v765
        %v791 = vpack.c.b16 %v768, %v767
        %v792 = vpack.c.b16 %v770, %v769
        %v793 = vpack.c.b16 %v772, %v771
        %v794 = vpack.c.b16 %v774, %v773
        %v795 = vpack.c.b16 %v776, %v775
        %v796 = vpack.c.b16 %v778, %v777
        %v797 = vpack.c.b16 %v780, %v779
        %v798 = vpack.c.b16 %v782, %v781
        %815 = vmatprep.subr.bf16.mxu0 0
        %816 = vmatpush1.bf16.msra.mxu0 %v790
        %817 = vmatprep.subr.bf16.mxu0 0
        %818 = vmatpush1.bf16.msra.mxu0 %v789
        %819 = vmatprep.subr.bf16.mxu0 0
        %820 = vmatpush1.bf16.msra.mxu0 %v788
        %821 = vmatprep.subr.bf16.mxu0 0
        %822 = vmatpush1.bf16.msra.mxu0 %v787
        %823 = vmatprep.subr.bf16.mxu0 0
        %824 = vmatpush1.bf16.msra.mxu0 %v786
        %825 = vmatprep.subr.bf16.mxu0 0
        %826 = vmatpush1.bf16.msra.mxu0 %v785
        %827 = vmatprep.subr.bf16.mxu0 0
        %828 = vmatpush1.bf16.msra.mxu0 %v784
        %829 = vmatprep.subr.bf16.mxu0 0
        %830 = vmatpush1.bf16.msra.mxu0 %v783
        %831 = vmatprep.subr.bf16.mxu0 0
        %832 = vmatpush2.bf16.msra.mxu0 %v798
        %833 = vmatprep.subr.bf16.mxu0 0
        %834 = vmatpush2.bf16.msra.mxu0 %v797
        %835 = vmatprep.subr.bf16.mxu0 0
        %836 = vmatpush2.bf16.msra.mxu0 %v796
        %837 = vmatprep.subr.bf16.mxu0 0
        %838 = vmatpush2.bf16.msra.mxu0 %v795
        %839 = vmatprep.subr.bf16.mxu0 0
        %840 = vmatpush2.bf16.msra.mxu0 %v794
        %841 = vmatprep.subr.bf16.mxu0 0
        %842 = vmatpush2.bf16.msra.mxu0 %v793
        %843 = vmatprep.subr.bf16.mxu0 0
        %844 = vmatpush2.bf16.msra.mxu0 %v792
        %845 = vmatprep.subr.bf16.mxu0 0
        %846 = vmatpush2.bf16.msra.mxu0 %v791
        %847 = vmatprep.mubr.bf16.mxu0 %v656
        %848 = vmatmul.mubr.bf16.gmra.mxu0 %v655
        %v849 = vpop.f32.mrf.mxu0
        %v850 = vadd.f32 0.0, %v849
        %v851 = vpop.f32.mrf.mxu0
        %v852 = vpop.f32.mrf.mxu0
        %v853 = vadd.f32 0.0, %v852
        %v854 = vpop.f32.mrf.mxu0
        %855 = vmatprep.mubr.bf16.mxu0 %v658
        %856 = vmatmul.mubr.bf16.gmra.mxu0 %v657
        %v857 = vpop.f32.mrf.mxu0
        %v858 = vadd.f32 0.0, %v857
        %v859 = vpop.f32.mrf.mxu0
        %v860 = vpop.f32.mrf.mxu0
        %v861 = vadd.f32 0.0, %v860
        %v862 = vpop.f32.mrf.mxu0
        %863 = vmatprep.mubr.bf16.mxu0 %v660
        %864 = vmatmul.mubr.bf16.gmra.mxu0 %v659
        %v865 = vpop.f32.mrf.mxu0
        %v866 = vadd.f32 0.0, %v865
        %v867 = vpop.f32.mrf.mxu0
        %v868 = vpop.f32.mrf.mxu0
        %v869 = vadd.f32 0.0, %v868
        %v870 = vpop.f32.mrf.mxu0
        %871 = vmatprep.mubr.bf16.mxu0 %v662
        %872 = vmatmul.mubr.bf16.gmra.mxu0 %v661
        %v873 = vpop.f32.mrf.mxu0
        %v874 = vadd.f32 0.0, %v873
        %v875 = vpop.f32.mrf.mxu0
        %v876 = vpop.f32.mrf.mxu0
        %v877 = vadd.f32 0.0, %v876
        %v878 = vpop.f32.mrf.mxu0
        %879 = vmatprep.mubr.bf16.mxu0 %v664
        %880 = vmatmul.mubr.bf16.gmra.mxu0 %v663
        %v881 = vpop.f32.mrf.mxu0
        %v882 = vadd.f32 0.0, %v881
        %v883 = vpop.f32.mrf.mxu0
        %v884 = vpop.f32.mrf.mxu0
        %v885 = vadd.f32 0.0, %v884
        %v886 = vpop.f32.mrf.mxu0
        %887 = vmatprep.mubr.bf16.mxu0 %v666
        %888 = vmatmul.mubr.bf16.gmra.mxu0 %v665
        %v889 = vpop.f32.mrf.mxu0
        %v890 = vadd.f32 0.0, %v889
        %v891 = vpop.f32.mrf.mxu0
        %v892 = vpop.f32.mrf.mxu0
        %v893 = vadd.f32 0.0, %v892
        %v894 = vpop.f32.mrf.mxu0
        %895 = vmatprep.mubr.bf16.mxu0 %v668
        %896 = vmatmul.mubr.bf16.gmra.mxu0 %v667
        %v897 = vpop.f32.mrf.mxu0
        %v898 = vadd.f32 0.0, %v897
        %v899 = vpop.f32.mrf.mxu0
        %v900 = vpop.f32.mrf.mxu0
        %v901 = vadd.f32 0.0, %v900
        %v902 = vpop.f32.mrf.mxu0
        %903 = vmatprep.mubr.bf16.mxu0 %v670
        %904 = vmatmul.mubr.bf16.gmra.mxu0 %v669
        %v905 = vpop.f32.mrf.mxu0
        %v906 = vadd.f32 0.0, %v905
        %v907 = vpop.f32.mrf.mxu0
        %v908 = vpop.f32.mrf.mxu0
        %v909 = vadd.f32 0.0, %v908
        %v910 = vpop.f32.mrf.mxu0
        %911 = vmatprep.mubr.bf16.mxu0 %v672
        %912 = vmatmul.mubr.bf16.gmra.mxu0 %v671
        %v913 = vpop.f32.mrf.mxu0
        %v914 = vadd.f32 0.0, %v913
        %v915 = vpop.f32.mrf.mxu0
        %v916 = vpop.f32.mrf.mxu0
        %v917 = vadd.f32 0.0, %v916
        %v918 = vpop.f32.mrf.mxu0
        %919 = vmatprep.mubr.bf16.mxu0 %v674
        %920 = vmatmul.mubr.bf16.gmra.mxu0 %v673
        %v921 = vpop.f32.mrf.mxu0
        %v922 = vadd.f32 0.0, %v921
        %v923 = vpop.f32.mrf.mxu0
        %v924 = vpop.f32.mrf.mxu0
        %v925 = vadd.f32 0.0, %v924
        %v926 = vpop.f32.mrf.mxu0
        %927 = vmatprep.mubr.bf16.mxu0 %v676
        %928 = vmatmul.mubr.bf16.gmra.mxu0 %v675
        %v929 = vpop.f32.mrf.mxu0
        %v930 = vadd.f32 0.0, %v929
        %v931 = vpop.f32.mrf.mxu0
        %v932 = vpop.f32.mrf.mxu0
        %v933 = vadd.f32 0.0, %v932
        %v934 = vpop.f32.mrf.mxu0
        %935 = vmatprep.mubr.bf16.mxu0 %v678
        %936 = vmatmul.mubr.bf16.gmra.mxu0 %v677
        %v937 = vpop.f32.mrf.mxu0
        %v938 = vadd.f32 0.0, %v937
        %v939 = vpop.f32.mrf.mxu0
        %v940 = vpop.f32.mrf.mxu0
        %v941 = vadd.f32 0.0, %v940
        %v942 = vpop.f32.mrf.mxu0
        %943 = vmatprep.mubr.bf16.mxu0 %v680
        %944 = vmatmul.mubr.bf16.gmra.mxu0 %v679
        %v945 = vpop.f32.mrf.mxu0
        %v946 = vadd.f32 0.0, %v945
        %v947 = vpop.f32.mrf.mxu0
        %v948 = vpop.f32.mrf.mxu0
        %v949 = vadd.f32 0.0, %v948
        %v950 = vpop.f32.mrf.mxu0
        %951 = vmatprep.mubr.bf16.mxu0 %v682
        %952 = vmatmul.mubr.bf16.gmra.mxu0 %v681
        %v953 = vpop.f32.mrf.mxu0
        %v954 = vadd.f32 0.0, %v953
        %v955 = vpop.f32.mrf.mxu0
        %v956 = vpop.f32.mrf.mxu0
        %v957 = vadd.f32 0.0, %v956
        %v958 = vpop.f32.mrf.mxu0
        %959 = vmatprep.mubr.bf16.mxu0 %v684
        %960 = vmatmul.mubr.bf16.gmra.mxu0 %v683
        %v961 = vpop.f32.mrf.mxu0
        %v962 = vadd.f32 0.0, %v961
        %v963 = vpop.f32.mrf.mxu0
        %v964 = vpop.f32.mrf.mxu0
        %v965 = vadd.f32 0.0, %v964
        %v966 = vpop.f32.mrf.mxu0
        %967 = vmatprep.mubr.bf16.mxu0 %v686
        %968 = vmatmul.mubr.bf16.gmra.mxu0 %v685
        %v969 = vpop.f32.mrf.mxu0
        %v970 = vadd.f32 0.0, %v969
        %v971 = vpop.f32.mrf.mxu0
        %v972 = vpop.f32.mrf.mxu0
        %v973 = vadd.f32 0.0, %v972
        %v974 = vpop.f32.mrf.mxu0
        %975 = vdwg.mxu0
        %v976 = vadd.f32 %v463, %v850
        %v977 = vadd.f32 %v464, %v853
        %v978 = vadd.f32 %v465, %v858
        %v979 = vadd.f32 %v466, %v861
        %v980 = vadd.f32 %v467, %v866
        %v981 = vadd.f32 %v468, %v869
        %v982 = vadd.f32 %v469, %v874
        %v983 = vadd.f32 %v470, %v877
        %v984 = vadd.f32 %v471, %v882
        %v985 = vadd.f32 %v472, %v885
        %v986 = vadd.f32 %v473, %v890
        %v987 = vadd.f32 %v474, %v893
        %v988 = vadd.f32 %v475, %v898
        %v989 = vadd.f32 %v476, %v901
        %v990 = vadd.f32 %v477, %v906
        %v991 = vadd.f32 %v478, %v909
        %v992 = vadd.f32 %v479, %v914
        %v993 = vadd.f32 %v480, %v917
        %v994 = vadd.f32 %v481, %v922
        %v995 = vadd.f32 %v482, %v925
        %v996 = vadd.f32 %v483, %v930
        %v997 = vadd.f32 %v484, %v933
        %v998 = vadd.f32 %v485, %v938
        %v999 = vadd.f32 %v486, %v941
        %v1000 = vadd.f32 %v487, %v946
        %v1001 = vadd.f32 %v488, %v949
        %v1002 = vadd.f32 %v489, %v954
        %v1003 = vadd.f32 %v490, %v957
        %v1004 = vadd.f32 %v491, %v962
        %v1005 = vadd.f32 %v492, %v965
        %v1006 = vadd.f32 %v493, %v970
        %v1007 = vadd.f32 %v494, %v973
        %1008 = vst [vmem:[#allocation2] sm:$0xff] %v976
        %1009 = vst [vmem:[#allocation2 + $0x10] sm:$0xff] %v977
        %1010 = vst [vmem:[#allocation2 + $0x20] sm:$0xff] %v978
        %1011 = vst [vmem:[#allocation2 + $0x30] sm:$0xff] %v979
        %1012 = vst [vmem:[#allocation2 + $0x40] sm:$0xff] %v980
        %1013 = vst [vmem:[#allocation2 + $0x50] sm:$0xff] %v981
        %1014 = vst [vmem:[#allocation2 + $0x60] sm:$0xff] %v982
        %1015 = vst [vmem:[#allocation2 + $0x70] sm:$0xff] %v983
        %1016 = vst [vmem:[#allocation2 + $0x80] sm:$0xff] %v984
        %1017 = vst [vmem:[#allocation2 + $0x90] sm:$0xff] %v985
        %1018 = vst [vmem:[#allocation2 + $0xa0] sm:$0xff] %v986
        %1019 = vst [vmem:[#allocation2 + $0xb0] sm:$0xff] %v987
        %1020 = vst [vmem:[#allocation2 + $0xc0] sm:$0xff] %v988
        %1021 = vst [vmem:[#allocation2 + $0xd0] sm:$0xff] %v989
        %1022 = vst [vmem:[#allocation2 + $0xe0] sm:$0xff] %v990
        %1023 = vst [vmem:[#allocation2 + $0xf0] sm:$0xff] %v991
        %1024 = vst [vmem:[#allocation2 + $0x100] sm:$0xff] %v992
        %1025 = vst [vmem:[#allocation2 + $0x110] sm:$0xff] %v993
        %1026 = vst [vmem:[#allocation2 + $0x120] sm:$0xff] %v994
        %1027 = vst [vmem:[#allocation2 + $0x130] sm:$0xff] %v995
        %1028 = vst [vmem:[#allocation2 + $0x140] sm:$0xff] %v996
        %1029 = vst [vmem:[#allocation2 + $0x150] sm:$0xff] %v997
        %1030 = vst [vmem:[#allocation2 + $0x160] sm:$0xff] %v998
        %1031 = vst [vmem:[#allocation2 + $0x170] sm:$0xff] %v999
        %1032 = vst [vmem:[#allocation2 + $0x180] sm:$0xff] %v1000
        %1033 = vst [vmem:[#allocation2 + $0x190] sm:$0xff] %v1001
        %1034 = vst [vmem:[#allocation2 + $0x1a0] sm:$0xff] %v1002
        %1035 = vst [vmem:[#allocation2 + $0x1b0] sm:$0xff] %v1003
        %1036 = vst [vmem:[#allocation2 + $0x1c0] sm:$0xff] %v1004
        %1037 = vst [vmem:[#allocation2 + $0x1d0] sm:$0xff] %v1005
        %1038 = vst [vmem:[#allocation2 + $0x1e0] sm:$0xff] %v1006
        %1039 = vst [vmem:[#allocation2 + $0x1f0] sm:$0xff] %v1007
        %p1040 = scmp.eq.s32.totalorder %s30, 1
        // Predicated region
        $region57: #{tpu_custom_call.1} parent=35 // pred_check
          %p1041 = pneg %p1040
        $region58: #{tpu_custom_call.1} parent=35 // pred_check_branch
          %1043 = sbr.rel (%p1041) target = $region60
        $region59: #{tpu_custom_call.1} parent=35 // pred_region
          %v1044 = vld [vmem:[#allocation2] sm:$0xff]
          %v1045 = vld [vmem:[#allocation2 + $0x8] sm:$0xff]
          %v1046 = vld [vmem:[#allocation2 + $0x10] sm:$0xff]
          %v1047 = vld [vmem:[#allocation2 + $0x18] sm:$0xff]
          %v1048 = vld [vmem:[#allocation2 + $0x20] sm:$0xff]
          %v1049 = vld [vmem:[#allocation2 + $0x28] sm:$0xff]
          %v1050 = vld [vmem:[#allocation2 + $0x30] sm:$0xff]
          %v1051 = vld [vmem:[#allocation2 + $0x38] sm:$0xff]
          %v1052 = vld [vmem:[#allocation2 + $0x40] sm:$0xff]
          %v1053 = vld [vmem:[#allocation2 + $0x48] sm:$0xff]
          %v1054 = vld [vmem:[#allocation2 + $0x50] sm:$0xff]
          %v1055 = vld [vmem:[#allocation2 + $0x58] sm:$0xff]
          %v1056 = vld [vmem:[#allocation2 + $0x60] sm:$0xff]
          %v1057 = vld [vmem:[#allocation2 + $0x68] sm:$0xff]
          %v1058 = vld [vmem:[#allocation2 + $0x70] sm:$0xff]
          %v1059 = vld [vmem:[#allocation2 + $0x78] sm:$0xff]
          %v1060 = vld [vmem:[#allocation2 + $0x80] sm:$0xff]
          %v1061 = vld [vmem:[#allocation2 + $0x88] sm:$0xff]
          %v1062 = vld [vmem:[#allocation2 + $0x90] sm:$0xff]
          %v1063 = vld [vmem:[#allocation2 + $0x98] sm:$0xff]
          %v1064 = vld [vmem:[#allocation2 + $0xa0] sm:$0xff]
          %v1065 = vld [vmem:[#allocation2 + $0xa8] sm:$0xff]
          %v1066 = vld [vmem:[#allocation2 + $0xb0] sm:$0xff]
          %v1067 = vld [vmem:[#allocation2 + $0xb8] sm:$0xff]
          %v1068 = vld [vmem:[#allocation2 + $0xc0] sm:$0xff]
          %v1069 = vld [vmem:[#allocation2 + $0xc8] sm:$0xff]
          %v1070 = vld [vmem:[#allocation2 + $0xd0] sm:$0xff]
          %v1071 = vld [vmem:[#allocation2 + $0xd8] sm:$0xff]
          %v1072 = vld [vmem:[#allocation2 + $0xe0] sm:$0xff]
          %v1073 = vld [vmem:[#allocation2 + $0xe8] sm:$0xff]
          %v1074 = vld [vmem:[#allocation2 + $0xf0] sm:$0xff]
          %v1075 = vld [vmem:[#allocation2 + $0xf8] sm:$0xff]
          %v1076 = vld [vmem:[#allocation2 + $0x100] sm:$0xff]
          %v1077 = vld [vmem:[#allocation2 + $0x108] sm:$0xff]
          %v1078 = vld [vmem:[#allocation2 + $0x110] sm:$0xff]
          %v1079 = vld [vmem:[#allocation2 + $0x118] sm:$0xff]
          %v1080 = vld [vmem:[#allocation2 + $0x120] sm:$0xff]
          %v1081 = vld [vmem:[#allocation2 + $0x128] sm:$0xff]
          %v1082 = vld [vmem:[#allocation2 + $0x130] sm:$0xff]
          %v1083 = vld [vmem:[#allocation2 + $0x138] sm:$0xff]
          %v1084 = vld [vmem:[#allocation2 + $0x140] sm:$0xff]
          %v1085 = vld [vmem:[#allocation2 + $0x148] sm:$0xff]
          %v1086 = vld [vmem:[#allocation2 + $0x150] sm:$0xff]
          %v1087 = vld [vmem:[#allocation2 + $0x158] sm:$0xff]
          %v1088 = vld [vmem:[#allocation2 + $0x160] sm:$0xff]
          %v1089 = vld [vmem:[#allocation2 + $0x168] sm:$0xff]
          %v1090 = vld [vmem:[#allocation2 + $0x170] sm:$0xff]
          %v1091 = vld [vmem:[#allocation2 + $0x178] sm:$0xff]
          %v1092 = vld [vmem:[#allocation2 + $0x180] sm:$0xff]
          %v1093 = vld [vmem:[#allocation2 + $0x188] sm:$0xff]
          %v1094 = vld [vmem:[#allocation2 + $0x190] sm:$0xff]
          %v1095 = vld [vmem:[#allocation2 + $0x198] sm:$0xff]
          %v1096 = vld [vmem:[#allocation2 + $0x1a0] sm:$0xff]
          %v1097 = vld [vmem:[#allocation2 + $0x1a8] sm:$0xff]
          %v1098 = vld [vmem:[#allocation2 + $0x1b0] sm:$0xff]
          %v1099 = vld [vmem:[#allocation2 + $0x1b8] sm:$0xff]
          %v1100 = vld [vmem:[#allocation2 + $0x1c0] sm:$0xff]
          %v1101 = vld [vmem:[#allocation2 + $0x1c8] sm:$0xff]
          %v1102 = vld [vmem:[#allocation2 + $0x1d0] sm:$0xff]
          %v1103 = vld [vmem:[#allocation2 + $0x1d8] sm:$0xff]
          %v1104 = vld [vmem:[#allocation2 + $0x1e0] sm:$0xff]
          %v1105 = vld [vmem:[#allocation2 + $0x1e8] sm:$0xff]
          %v1106 = vld [vmem:[#allocation2 + $0x1f0] sm:$0xff]
          %v1107 = vld [vmem:[#allocation2 + $0x1f8] sm:$0xff]
          %v1108 = vpack.c.bf16 %v1046, %v1044
          %v1109 = vpack.c.bf16 %v1047, %v1045
          %v1110 = vpack.c.bf16 %v1050, %v1048
          %v1111 = vpack.c.bf16 %v1051, %v1049
          %v1112 = vpack.c.bf16 %v1054, %v1052
          %v1113 = vpack.c.bf16 %v1055, %v1053
          %v1114 = vpack.c.bf16 %v1058, %v1056
          %v1115 = vpack.c.bf16 %v1059, %v1057
          %v1116 = vpack.c.bf16 %v1062, %v1060
          %v1117 = vpack.c.bf16 %v1063, %v1061
          %v1118 = vpack.c.bf16 %v1066, %v1064
          %v1119 = vpack.c.bf16 %v1067, %v1065
          %v1120 = vpack.c.bf16 %v1070, %v1068
          %v1121 = vpack.c.bf16 %v1071, %v1069
          %v1122 = vpack.c.bf16 %v1074, %v1072
          %v1123 = vpack.c.bf16 %v1075, %v1073
          %v1124 = vpack.c.bf16 %v1078, %v1076
          %v1125 = vpack.c.bf16 %v1079, %v1077
          %v1126 = vpack.c.bf16 %v1082, %v1080
          %v1127 = vpack.c.bf16 %v1083, %v1081
          %v1128 = vpack.c.bf16 %v1086, %v1084
          %v1129 = vpack.c.bf16 %v1087, %v1085
          %v1130 = vpack.c.bf16 %v1090, %v1088
          %v1131 = vpack.c.bf16 %v1091, %v1089
          %v1132 = vpack.c.bf16 %v1094, %v1092
          %v1133 = vpack.c.bf16 %v1095, %v1093
          %v1134 = vpack.c.bf16 %v1098, %v1096
          %v1135 = vpack.c.bf16 %v1099, %v1097
          %v1136 = vpack.c.bf16 %v1102, %v1100
          %v1137 = vpack.c.bf16 %v1103, %v1101
          %v1138 = vpack.c.bf16 %v1106, %v1104
          %v1139 = vpack.c.bf16 %v1107, %v1105
          %v1140 = vld [vmem:[#allocation9] sm:$0xf]
          %v1141 = vld [vmem:[#allocation9 + $0x4] sm:$0xf]
          %v1142 = vld [vmem:[#allocation9 + $0x8] sm:$0xf]
          %v1143 = vld [vmem:[#allocation9 + $0xc] sm:$0xf]
          %v1144 = vld [vmem:[#allocation9 + $0x10] sm:$0xf]
          %v1145 = vld [vmem:[#allocation9 + $0x14] sm:$0xf]
          %v1146 = vld [vmem:[#allocation9 + $0x18] sm:$0xf]
          %v1147 = vld [vmem:[#allocation9 + $0x1c] sm:$0xf]
          %v1148 = vld [vmem:[#allocation9 + $0x20] sm:$0xf]
          %v1149 = vld [vmem:[#allocation9 + $0x24] sm:$0xf]
          %v1150 = vld [vmem:[#allocation9 + $0x28] sm:$0xf]
          %v1151 = vld [vmem:[#allocation9 + $0x2c] sm:$0xf]
          %v1152 = vld [vmem:[#allocation9 + $0x30] sm:$0xf]
          %v1153 = vld [vmem:[#allocation9 + $0x34] sm:$0xf]
          %v1154 = vld [vmem:[#allocation9 + $0x38] sm:$0xf]
          %v1155 = vld [vmem:[#allocation9 + $0x3c] sm:$0xf]
          %v1156 = vld [vmem:[#allocation9 + $0x40] sm:$0xf]
          %v1157 = vld [vmem:[#allocation9 + $0x44] sm:$0xf]
          %v1158 = vld [vmem:[#allocation9 + $0x48] sm:$0xf]
          %v1159 = vld [vmem:[#allocation9 + $0x4c] sm:$0xf]
          %v1160 = vld [vmem:[#allocation9 + $0x50] sm:$0xf]
          %v1161 = vld [vmem:[#allocation9 + $0x54] sm:$0xf]
          %v1162 = vld [vmem:[#allocation9 + $0x58] sm:$0xf]
          %v1163 = vld [vmem:[#allocation9 + $0x5c] sm:$0xf]
          %v1164 = vld [vmem:[#allocation9 + $0x60] sm:$0xf]
          %v1165 = vld [vmem:[#allocation9 + $0x64] sm:$0xf]
          %v1166 = vld [vmem:[#allocation9 + $0x68] sm:$0xf]
          %v1167 = vld [vmem:[#allocation9 + $0x6c] sm:$0xf]
          %v1168 = vld [vmem:[#allocation9 + $0x70] sm:$0xf]
          %v1169 = vld [vmem:[#allocation9 + $0x74] sm:$0xf]
          %v1170 = vld [vmem:[#allocation9 + $0x78] sm:$0xf]
          %v1171 = vld [vmem:[#allocation9 + $0x7c] sm:$0xf]
          %v1204 = vunpack.c.l.b16 %v1140
          %v1205 = vunpack.c.l.b16 %v1141
          %v1206 = vunpack.c.l.b16 %v1142
          %v1207 = vunpack.c.l.b16 %v1143
          %v1208 = vunpack.c.l.b16 %v1144
          %v1209 = vunpack.c.l.b16 %v1145
          %v1210 = vunpack.c.l.b16 %v1146
          %v1211 = vunpack.c.l.b16 %v1147
          %v1212 = vunpack.c.l.b16 %v1148
          %v1213 = vunpack.c.l.b16 %v1149
          %v1214 = vunpack.c.l.b16 %v1150
          %v1215 = vunpack.c.l.b16 %v1151
          %v1216 = vunpack.c.l.b16 %v1152
          %v1217 = vunpack.c.l.b16 %v1153
          %v1218 = vunpack.c.l.b16 %v1154
          %v1219 = vunpack.c.l.b16 %v1155
          %v1220 = vunpack.c.l.b16 %v1156
          %v1221 = vunpack.c.l.b16 %v1157
          %v1222 = vunpack.c.l.b16 %v1158
          %v1223 = vunpack.c.l.b16 %v1159
          %v1224 = vunpack.c.l.b16 %v1160
          %v1225 = vunpack.c.l.b16 %v1161
          %v1226 = vunpack.c.l.b16 %v1162
          %v1227 = vunpack.c.l.b16 %v1163
          %v1228 = vunpack.c.l.b16 %v1164
          %v1229 = vunpack.c.l.b16 %v1165
          %v1230 = vunpack.c.l.b16 %v1166
          %v1231 = vunpack.c.l.b16 %v1167
          %v1232 = vunpack.c.l.b16 %v1168
          %v1233 = vunpack.c.l.b16 %v1169
          %v1234 = vunpack.c.l.b16 %v1170
          %v1235 = vunpack.c.l.b16 %v1171
          %v1236 = vpack.c.b16 %v1205, %v1204
          %v1237 = vpack.c.b16 %v1207, %v1206
          %v1238 = vpack.c.b16 %v1209, %v1208
          %v1239 = vpack.c.b16 %v1211, %v1210
          %v1240 = vpack.c.b16 %v1213, %v1212
          %v1241 = vpack.c.b16 %v1215, %v1214
          %v1242 = vpack.c.b16 %v1217, %v1216
          %v1243 = vpack.c.b16 %v1219, %v1218
          %v1244 = vpack.c.b16 %v1221, %v1220
          %v1245 = vpack.c.b16 %v1223, %v1222
          %v1246 = vpack.c.b16 %v1225, %v1224
          %v1247 = vpack.c.b16 %v1227, %v1226
          %v1248 = vpack.c.b16 %v1229, %v1228
          %v1249 = vpack.c.b16 %v1231, %v1230
          %v1250 = vpack.c.b16 %v1233, %v1232
          %v1251 = vpack.c.b16 %v1235, %v1234
          %1268 = vmatprep.subr.bf16.mxu0 0
          %1269 = vmatpush1.bf16.msra.mxu0 %v1243
          %1270 = vmatprep.subr.bf16.mxu0 0
          %1271 = vmatpush1.bf16.msra.mxu0 %v1242
          %1272 = vmatprep.subr.bf16.mxu0 0
          %1273 = vmatpush1.bf16.msra.mxu0 %v1241
          %1274 = vmatprep.subr.bf16.mxu0 0
          %1275 = vmatpush1.bf16.msra.mxu0 %v1240
          %1276 = vmatprep.subr.bf16.mxu0 0
          %1277 = vmatpush1.bf16.msra.mxu0 %v1239
          %1278 = vmatprep.subr.bf16.mxu0 0
          %1279 = vmatpush1.bf16.msra.mxu0 %v1238
          %1280 = vmatprep.subr.bf16.mxu0 0
          %1281 = vmatpush1.bf16.msra.mxu0 %v1237
          %1282 = vmatprep.subr.bf16.mxu0 0
          %1283 = vmatpush1.bf16.msra.mxu0 %v1236
          %1284 = vmatprep.subr.bf16.mxu0 0
          %1285 = vmatpush2.bf16.msra.mxu0 %v1251
          %1286 = vmatprep.subr.bf16.mxu0 0
          %1287 = vmatpush2.bf16.msra.mxu0 %v1250
          %1288 = vmatprep.subr.bf16.mxu0 0
          %1289 = vmatpush2.bf16.msra.mxu0 %v1249
          %1290 = vmatprep.subr.bf16.mxu0 0
          %1291 = vmatpush2.bf16.msra.mxu0 %v1248
          %1292 = vmatprep.subr.bf16.mxu0 0
          %1293 = vmatpush2.bf16.msra.mxu0 %v1247
          %1294 = vmatprep.subr.bf16.mxu0 0
          %1295 = vmatpush2.bf16.msra.mxu0 %v1246
          %1296 = vmatprep.subr.bf16.mxu0 0
          %1297 = vmatpush2.bf16.msra.mxu0 %v1245
          %1298 = vmatprep.subr.bf16.mxu0 0
          %1299 = vmatpush2.bf16.msra.mxu0 %v1244
          %1300 = vmatprep.mubr.bf16.mxu0 %v1109
          %1301 = vmatmul.mubr.bf16.gmra.mxu0 %v1108
          %v1302 = vpop.f32.mrf.mxu0
          %v1303 = vadd.f32 0.0, %v1302
          %v1304 = vpop.f32.mrf.mxu0
          %v1305 = vpop.f32.mrf.mxu0
          %v1306 = vadd.f32 0.0, %v1305
          %v1307 = vpop.f32.mrf.mxu0
          %1308 = vmatprep.mubr.bf16.mxu0 %v1111
          %1309 = vmatmul.mubr.bf16.gmra.mxu0 %v1110
          %v1310 = vpop.f32.mrf.mxu0
          %v1311 = vadd.f32 0.0, %v1310
          %v1312 = vpop.f32.mrf.mxu0
          %v1313 = vpop.f32.mrf.mxu0
          %v1314 = vadd.f32 0.0, %v1313
          %v1315 = vpop.f32.mrf.mxu0
          %1316 = vmatprep.mubr.bf16.mxu0 %v1113
          %1317 = vmatmul.mubr.bf16.gmra.mxu0 %v1112
          %v1318 = vpop.f32.mrf.mxu0
          %v1319 = vadd.f32 0.0, %v1318
          %v1320 = vpop.f32.mrf.mxu0
          %v1321 = vpop.f32.mrf.mxu0
          %v1322 = vadd.f32 0.0, %v1321
          %v1323 = vpop.f32.mrf.mxu0
          %1324 = vmatprep.mubr.bf16.mxu0 %v1115
          %1325 = vmatmul.mubr.bf16.gmra.mxu0 %v1114
          %v1326 = vpop.f32.mrf.mxu0
          %v1327 = vadd.f32 0.0, %v1326
          %v1328 = vpop.f32.mrf.mxu0
          %v1329 = vpop.f32.mrf.mxu0
          %v1330 = vadd.f32 0.0, %v1329
          %v1331 = vpop.f32.mrf.mxu0
          %1332 = vmatprep.mubr.bf16.mxu0 %v1117
          %1333 = vmatmul.mubr.bf16.gmra.mxu0 %v1116
          %v1334 = vpop.f32.mrf.mxu0
          %v1335 = vadd.f32 0.0, %v1334
          %v1336 = vpop.f32.mrf.mxu0
          %v1337 = vpop.f32.mrf.mxu0
          %v1338 = vadd.f32 0.0, %v1337
          %v1339 = vpop.f32.mrf.mxu0
          %1340 = vmatprep.mubr.bf16.mxu0 %v1119
          %1341 = vmatmul.mubr.bf16.gmra.mxu0 %v1118
          %v1342 = vpop.f32.mrf.mxu0
          %v1343 = vadd.f32 0.0, %v1342
          %v1344 = vpop.f32.mrf.mxu0
          %v1345 = vpop.f32.mrf.mxu0
          %v1346 = vadd.f32 0.0, %v1345
          %v1347 = vpop.f32.mrf.mxu0
          %1348 = vmatprep.mubr.bf16.mxu0 %v1121
          %1349 = vmatmul.mubr.bf16.gmra.mxu0 %v1120
          %v1350 = vpop.f32.mrf.mxu0
          %v1351 = vadd.f32 0.0, %v1350
          %v1352 = vpop.f32.mrf.mxu0
          %v1353 = vpop.f32.mrf.mxu0
          %v1354 = vadd.f32 0.0, %v1353
          %v1355 = vpop.f32.mrf.mxu0
          %1356 = vmatprep.mubr.bf16.mxu0 %v1123
          %1357 = vmatmul.mubr.bf16.gmra.mxu0 %v1122
          %v1358 = vpop.f32.mrf.mxu0
          %v1359 = vadd.f32 0.0, %v1358
          %v1360 = vpop.f32.mrf.mxu0
          %v1361 = vpop.f32.mrf.mxu0
          %v1362 = vadd.f32 0.0, %v1361
          %v1363 = vpop.f32.mrf.mxu0
          %1364 = vmatprep.mubr.bf16.mxu0 %v1125
          %1365 = vmatmul.mubr.bf16.gmra.mxu0 %v1124
          %v1366 = vpop.f32.mrf.mxu0
          %v1367 = vadd.f32 0.0, %v1366
          %v1368 = vpop.f32.mrf.mxu0
          %v1369 = vpop.f32.mrf.mxu0
          %v1370 = vadd.f32 0.0, %v1369
          %v1371 = vpop.f32.mrf.mxu0
          %1372 = vmatprep.mubr.bf16.mxu0 %v1127
          %1373 = vmatmul.mubr.bf16.gmra.mxu0 %v1126
          %v1374 = vpop.f32.mrf.mxu0
          %v1375 = vadd.f32 0.0, %v1374
          %v1376 = vpop.f32.mrf.mxu0
          %v1377 = vpop.f32.mrf.mxu0
          %v1378 = vadd.f32 0.0, %v1377
          %v1379 = vpop.f32.mrf.mxu0
          %1380 = vmatprep.mubr.bf16.mxu0 %v1129
          %1381 = vmatmul.mubr.bf16.gmra.mxu0 %v1128
          %v1382 = vpop.f32.mrf.mxu0
          %v1383 = vadd.f32 0.0, %v1382
          %v1384 = vpop.f32.mrf.mxu0
          %v1385 = vpop.f32.mrf.mxu0
          %v1386 = vadd.f32 0.0, %v1385
          %v1387 = vpop.f32.mrf.mxu0
          %1388 = vmatprep.mubr.bf16.mxu0 %v1131
          %1389 = vmatmul.mubr.bf16.gmra.mxu0 %v1130
          %v1390 = vpop.f32.mrf.mxu0
          %v1391 = vadd.f32 0.0, %v1390
          %v1392 = vpop.f32.mrf.mxu0
          %v1393 = vpop.f32.mrf.mxu0
          %v1394 = vadd.f32 0.0, %v1393
          %v1395 = vpop.f32.mrf.mxu0
          %1396 = vmatprep.mubr.bf16.mxu0 %v1133
          %1397 = vmatmul.mubr.bf16.gmra.mxu0 %v1132
          %v1398 = vpop.f32.mrf.mxu0
          %v1399 = vadd.f32 0.0, %v1398
          %v1400 = vpop.f32.mrf.mxu0
          %v1401 = vpop.f32.mrf.mxu0
          %v1402 = vadd.f32 0.0, %v1401
          %v1403 = vpop.f32.mrf.mxu0
          %1404 = vmatprep.mubr.bf16.mxu0 %v1135
          %1405 = vmatmul.mubr.bf16.gmra.mxu0 %v1134
          %v1406 = vpop.f32.mrf.mxu0
          %v1407 = vadd.f32 0.0, %v1406
          %v1408 = vpop.f32.mrf.mxu0
          %v1409 = vpop.f32.mrf.mxu0
          %v1410 = vadd.f32 0.0, %v1409
          %v1411 = vpop.f32.mrf.mxu0
          %1412 = vmatprep.mubr.bf16.mxu0 %v1137
          %1413 = vmatmul.mubr.bf16.gmra.mxu0 %v1136
          %v1414 = vpop.f32.mrf.mxu0
          %v1415 = vadd.f32 0.0, %v1414
          %v1416 = vpop.f32.mrf.mxu0
          %v1417 = vpop.f32.mrf.mxu0
          %v1418 = vadd.f32 0.0, %v1417
          %v1419 = vpop.f32.mrf.mxu0
          %1420 = vmatprep.mubr.bf16.mxu0 %v1139
          %1421 = vmatmul.mubr.bf16.gmra.mxu0 %v1138
          %v1422 = vpop.f32.mrf.mxu0
          %v1423 = vadd.f32 0.0, %v1422
          %v1424 = vpop.f32.mrf.mxu0
          %v1425 = vpop.f32.mrf.mxu0
          %v1426 = vadd.f32 0.0, %v1425
          %v1427 = vpop.f32.mrf.mxu0
          %1428 = vdwg.mxu0
          %v1429 = vmax.f32 %v1303, 0.0
          %v1430 = vmax.f32 %v1306, 0.0
          %v1431 = vmax.f32 %v1311, 0.0
          %v1432 = vmax.f32 %v1314, 0.0
          %v1433 = vmax.f32 %v1319, 0.0
          %v1434 = vmax.f32 %v1322, 0.0
          %v1435 = vmax.f32 %v1327, 0.0
          %v1436 = vmax.f32 %v1330, 0.0
          %v1437 = vmax.f32 %v1335, 0.0
          %v1438 = vmax.f32 %v1338, 0.0
          %v1439 = vmax.f32 %v1343, 0.0
          %v1440 = vmax.f32 %v1346, 0.0
          %v1441 = vmax.f32 %v1351, 0.0
          %v1442 = vmax.f32 %v1354, 0.0
          %v1443 = vmax.f32 %v1359, 0.0
          %v1444 = vmax.f32 %v1362, 0.0
          %v1445 = vmax.f32 %v1367, 0.0
          %v1446 = vmax.f32 %v1370, 0.0
          %v1447 = vmax.f32 %v1375, 0.0
          %v1448 = vmax.f32 %v1378, 0.0
          %v1449 = vmax.f32 %v1383, 0.0
          %v1450 = vmax.f32 %v1386, 0.0
          %v1451 = vmax.f32 %v1391, 0.0
          %v1452 = vmax.f32 %v1394, 0.0
          %v1453 = vmax.f32 %v1399, 0.0
          %v1454 = vmax.f32 %v1402, 0.0
          %v1455 = vmax.f32 %v1407, 0.0
          %v1456 = vmax.f32 %v1410, 0.0
          %v1457 = vmax.f32 %v1415, 0.0
          %v1458 = vmax.f32 %v1418, 0.0
          %v1459 = vmax.f32 %v1423, 0.0
          %v1460 = vmax.f32 %v1426, 0.0
          %v1461 = vpack.c.bf16 %v1430, %v1429
          %v1462 = vpack.c.bf16 %v1432, %v1431
          %v1463 = vpack.c.bf16 %v1434, %v1433
          %v1464 = vpack.c.bf16 %v1436, %v1435
          %v1465 = vpack.c.bf16 %v1438, %v1437
          %v1466 = vpack.c.bf16 %v1440, %v1439
          %v1467 = vpack.c.bf16 %v1442, %v1441
          %v1468 = vpack.c.bf16 %v1444, %v1443
          %v1469 = vpack.c.bf16 %v1446, %v1445
          %v1470 = vpack.c.bf16 %v1448, %v1447
          %v1471 = vpack.c.bf16 %v1450, %v1449
          %v1472 = vpack.c.bf16 %v1452, %v1451
          %v1473 = vpack.c.bf16 %v1454, %v1453
          %v1474 = vpack.c.bf16 %v1456, %v1455
          %v1475 = vpack.c.bf16 %v1458, %v1457
          %v1476 = vpack.c.bf16 %v1460, %v1459
          %v1493 = vunpack.c.l.b16 %v1461
          %v1494 = vunpack.c.h.b16 %v1461
          %v1495 = vunpack.c.l.b16 %v1462
          %v1496 = vunpack.c.h.b16 %v1462
          %v1497 = vunpack.c.l.b16 %v1463
          %v1498 = vunpack.c.h.b16 %v1463
          %v1499 = vunpack.c.l.b16 %v1464
          %v1500 = vunpack.c.h.b16 %v1464
          %v1501 = vunpack.c.l.b16 %v1465
          %v1502 = vunpack.c.h.b16 %v1465
          %v1503 = vunpack.c.l.b16 %v1466
          %v1504 = vunpack.c.h.b16 %v1466
          %v1505 = vunpack.c.l.b16 %v1467
          %v1506 = vunpack.c.h.b16 %v1467
          %v1507 = vunpack.c.l.b16 %v1468
          %v1508 = vunpack.c.h.b16 %v1468
          %v1509 = vunpack.c.l.b16 %v1469
          %v1510 = vunpack.c.h.b16 %v1469
          %v1511 = vunpack.c.l.b16 %v1470
          %v1512 = vunpack.c.h.b16 %v1470
          %v1513 = vunpack.c.l.b16 %v1471
          %v1514 = vunpack.c.h.b16 %v1471
          %v1515 = vunpack.c.l.b16 %v1472
          %v1516 = vunpack.c.h.b16 %v1472
          %v1517 = vunpack.c.l.b16 %v1473
          %v1518 = vunpack.c.h.b16 %v1473
          %v1519 = vunpack.c.l.b16 %v1474
          %v1520 = vunpack.c.h.b16 %v1474
          %v1521 = vunpack.c.l.b16 %v1475
          %v1522 = vunpack.c.h.b16 %v1475
          %v1523 = vunpack.c.l.b16 %v1476
          %v1524 = vunpack.c.h.b16 %v1476
          %v1525 = vpack.c.b16 %v1493, %v1493
          %v1526 = vpack.c.b16 %v1494, %v1494
          %v1527 = vpack.c.b16 %v1495, %v1495
          %v1528 = vpack.c.b16 %v1496, %v1496
          %v1529 = vpack.c.b16 %v1497, %v1497
          %v1530 = vpack.c.b16 %v1498, %v1498
          %v1531 = vpack.c.b16 %v1499, %v1499
          %v1532 = vpack.c.b16 %v1500, %v1500
          %v1533 = vpack.c.b16 %v1501, %v1501
          %v1534 = vpack.c.b16 %v1502, %v1502
          %v1535 = vpack.c.b16 %v1503, %v1503
          %v1536 = vpack.c.b16 %v1504, %v1504
          %v1537 = vpack.c.b16 %v1505, %v1505
          %v1538 = vpack.c.b16 %v1506, %v1506
          %v1539 = vpack.c.b16 %v1507, %v1507
          %v1540 = vpack.c.b16 %v1508, %v1508
          %v1541 = vpack.c.b16 %v1509, %v1509
          %v1542 = vpack.c.b16 %v1510, %v1510
          %v1543 = vpack.c.b16 %v1511, %v1511
          %v1544 = vpack.c.b16 %v1512, %v1512
          %v1545 = vpack.c.b16 %v1513, %v1513
          %v1546 = vpack.c.b16 %v1514, %v1514
          %v1547 = vpack.c.b16 %v1515, %v1515
          %v1548 = vpack.c.b16 %v1516, %v1516
          %v1549 = vpack.c.b16 %v1517, %v1517
          %v1550 = vpack.c.b16 %v1518, %v1518
          %v1551 = vpack.c.b16 %v1519, %v1519
          %v1552 = vpack.c.b16 %v1520, %v1520
          %v1553 = vpack.c.b16 %v1521, %v1521
          %v1554 = vpack.c.b16 %v1522, %v1522
          %v1555 = vpack.c.b16 %v1523, %v1523
          %v1556 = vpack.c.b16 %v1524, %v1524
          %1589 = vst [vmem:[%s324] sm:$0xf] %v1525
          %1590 = vst [vmem:[%s324 + $0x4] sm:$0xf] %v1526
          %1591 = vst [vmem:[%s324 + $0x8] sm:$0xf] %v1527
          %1592 = vst [vmem:[%s324 + $0xc] sm:$0xf] %v1528
          %1593 = vst [vmem:[%s324 + $0x10] sm:$0xf] %v1529
          %1594 = vst [vmem:[%s324 + $0x14] sm:$0xf] %v1530
          %1595 = vst [vmem:[%s324 + $0x18] sm:$0xf] %v1531
          %1596 = vst [vmem:[%s324 + $0x1c] sm:$0xf] %v1532
          %1597 = vst [vmem:[%s324 + $0x20] sm:$0xf] %v1533
          %1598 = vst [vmem:[%s324 + $0x24] sm:$0xf] %v1534
          %1599 = vst [vmem:[%s324 + $0x28] sm:$0xf] %v1535
          %1600 = vst [vmem:[%s324 + $0x2c] sm:$0xf] %v1536
          %1601 = vst [vmem:[%s324 + $0x30] sm:$0xf] %v1537
          %1602 = vst [vmem:[%s324 + $0x34] sm:$0xf] %v1538
          %1603 = vst [vmem:[%s324 + $0x38] sm:$0xf] %v1539
          %1604 = vst [vmem:[%s324 + $0x3c] sm:$0xf] %v1540
          %1605 = vst [vmem:[%s324 + $0x40] sm:$0xf] %v1541
          %1606 = vst [vmem:[%s324 + $0x44] sm:$0xf] %v1542
          %1607 = vst [vmem:[%s324 + $0x48] sm:$0xf] %v1543
          %1608 = vst [vmem:[%s324 + $0x4c] sm:$0xf] %v1544
          %1609 = vst [vmem:[%s324 + $0x50] sm:$0xf] %v1545
          %1610 = vst [vmem:[%s324 + $0x54] sm:$0xf] %v1546
          %1611 = vst [vmem:[%s324 + $0x58] sm:$0xf] %v1547
          %1612 = vst [vmem:[%s324 + $0x5c] sm:$0xf] %v1548
          %1613 = vst [vmem:[%s324 + $0x60] sm:$0xf] %v1549
          %1614 = vst [vmem:[%s324 + $0x64] sm:$0xf] %v1550
          %1615 = vst [vmem:[%s324 + $0x68] sm:$0xf] %v1551
          %1616 = vst [vmem:[%s324 + $0x6c] sm:$0xf] %v1552
          %1617 = vst [vmem:[%s324 + $0x70] sm:$0xf] %v1553
          %1618 = vst [vmem:[%s324 + $0x74] sm:$0xf] %v1554
          %1619 = vst [vmem:[%s324 + $0x78] sm:$0xf] %v1555
          %1620 = vst [vmem:[%s324 + $0x7c] sm:$0xf] %v1556
        $region60: #{tpu_custom_call.1} parent=35 // pred_fallthru
          _
        %s1621 = sand.u32 %s146, 1
        %s1622 = scalar_lea.sflag [#allocation5], %s1621
        %s1623 = sand.u32 %s146, 1
        %s1624 = smul.addr %s1623, 128
        %s1625 = scalar_lea.vmem [#allocation11], %s1624
        // Predicated region
        $region61: #{tpu_custom_call.1} parent=35 // pred_check
          %p1626 = pneg %p156
        $region62: #{tpu_custom_call.1} parent=35 // pred_check_branch
          %1628 = sbr.rel (%p1626) target = $region64
        $region63: #{tpu_custom_call.1} parent=35 // pred_region
          %s1629 = smul.u32 32, %s29
          %s1631 = ssub.s32 2048, 2048
          %1632 = vsyncadd %s1622, %s1631
          %s1633 = smul.addr %s1629, 64
          %s1634 = scalar_lea.hbm %s4, %s1633
          %s1635 = sshll.u32 %s1625, 4
          %s1636 = int_to_ptr.vmem [resolvable:$true] %s1635
          %1641 = dma.vmem_to_hbm [thread:$0]  %s1636, 2048, %s1634, %s1622, 64, 64, 4
        $region64: #{tpu_custom_call.1} parent=35 // pred_fallthru
          _
      $region36: #{tpu_custom_call.1} parent=5 // pred_fallthru
        _
      %p1642 = scmp.le.s32.totalorder 2, %s20
      // Predicated region
      $region65: #{tpu_custom_call.1} parent=5 // pred_check
        %p1643 = pneg %p1642
      $region66: #{tpu_custom_call.1} parent=5 // pred_check_branch
        %1645 = sbr.rel (%p1643) target = $region68
      $region67: #{tpu_custom_call.1} parent=5 // pred_region
        %s1646 = ssub.s32 %s20, 2
        // Predicated region
        $region69: #{tpu_custom_call.1} parent=67 // pred_check
          %p1647 = pneg %p162
        $region70: #{tpu_custom_call.1} parent=67 // pred_check_branch
          %1649 = sbr.rel (%p1647) target = $region72
        $region71: #{tpu_custom_call.1} parent=67 // pred_region
          %s1650 = sand.u32 %s147, 1
          %s1651 = scalar_lea.sflag [#allocation5], %s1650
          %s1652 = sand.u32 %s147, 1
          %s1653 = smul.addr %s1652, 128
          %s1654 = scalar_lea.vmem [#allocation11], %s1653
          %1655 = dma.done %s1651, 2048
        $region72: #{tpu_custom_call.1} parent=67 // pred_fallthru
          _
      $region68: #{tpu_custom_call.1} parent=5 // pred_fallthru
        _
    $region6: #{tpu_custom_call.1} parent=1 // loop_footer
      %s24 = sadd.s32 1, %s20
    $region7: #{tpu_custom_call.1} parent=1 // loop_footer_branch
      %19 = sbr.rel target = $region3
    $region8: #{tpu_custom_call.1} parent=1 // loop_exit
      _
    %1656 = vsyncpa [#allocation4], 1
    %s1657 = scalar_lea.sflag [#allocation4], 1
    %1658 = vsyncpa %s1657, 1
    %1659 = vsyncpa [#allocation7], 1
    %s1660 = scalar_lea.sflag [#allocation7], 1
    %1661 = vsyncpa %s1660, 1
    %1662 = vsyncpa [#allocation10], 1
    %1663 = vsyncpa [#allocation5], 1
    %s1664 = scalar_lea.sflag [#allocation5], 1
    %1665 = vsyncpa %s1664, 1

</llo_original>
